<compile_context>
chip_gen: v7x
topology: tpu7x:2x2x1
jax: 0.10.0
libtpu: 0.0.40
codegen_flags: <defaults>
</compile_context>

<pallas_src>
import jax
import jax.numpy as jnp
from jax.experimental import pallas as pl
from jax.experimental.pallas import tpu as pltpu


def attention_head_kernel(feat_ref, w_ref, p_ref, s_ref, out_ref):
    """Computes (eval mode, dropout = identity):
        att   = tanh(features @ W + bW)           # (B*S, H)  -- single 2-D bf16 MXU matmul
        score = att @ V + bV                      # (B*S, 1)  -- lane reduction
        attn  = softmax(score over seq)           # (B, S, 1)
        ctx   = sum(attn * features, axis=seq)    # (B, H)
        out   = ctx @ Wl + bl                     # (B, 1)
    Everything is VMEM-resident (shapes are small).
    """
    B, S, H = feat_ref.shape

    feat = feat_ref[...]                              # (B, S, H) f32

    # Packed parameter slab: row0=bW, row1=V, row2=Wl (rows 3..7 padding).
    bw = p_ref[0:1, :]                                # (1, H)
    v = p_ref[1:2, :]                                 # (1, H)
    wl = p_ref[2:3, :]                                # (1, H)
    # Scalar biases from SMEM (no cross-lane broadcast from a (1,1) VMEM slice).
    bv = s_ref[0]
    bl = s_ref[1]

    # --- W(features) + tanh on the flattened (B*S, H) layout.
    # bf16 x bf16 MXU matmul with f32 accumulation; no f32 copy of W is materialized.
    feat2d = feat.reshape(B * S, H)                   # layout-preserving split of sublanes
    att2d = jnp.tanh(
        jnp.dot(feat2d.astype(jnp.bfloat16), w_ref[...],
                preferred_element_type=jnp.float32) + bw
    )                                                 # (B*S, H) f32

    # --- V(att): output dim is 1 -> lane reduction, not a wasteful (H,1) matmul ---
    score2d = jnp.sum(att2d * v, axis=-1, keepdims=True) + bv          # (B*S, 1)

    # --- softmax over the sequence dimension (torch dim=1) ---
    score = score2d.reshape(B, S, 1)
    m = jnp.max(score, axis=1, keepdims=True)
    e = jnp.exp(score - m)
    attn = e * pl.reciprocal(jnp.sum(e, axis=1, keepdims=True), approx=True)  # (B, S, 1)

    # --- weighted sum of the original features over the sequence dimension ---
    ctx = jnp.sum(attn * feat, axis=1)                # (B, H)

    # dropout(p=0.1) is identity in eval mode

    # --- final Linear(H, 1) as a lane reduction ---
    out = jnp.sum(ctx * wl, axis=-1, keepdims=True) + bl               # (B, 1)
    out_ref[...] = out.astype(out_ref.dtype)


def pack_params(bw, v, wl):
    """Pack the small vector parameters into one (8, H) f32 slab (one DMA instead of three)."""
    H = bw.shape[-1]
    pad = jnp.zeros((5, H), dtype=jnp.float32)
    return jnp.concatenate(
        [bw.reshape(1, H), v.reshape(1, H), wl.reshape(1, H), pad], axis=0
    )


def model_head_forward(features, w_bf16, params, scalars):
    B, S, H = features.shape
    vmem = pl.BlockSpec(memory_space=pltpu.MemorySpace.VMEM)
    smem = pl.BlockSpec(memory_space=pltpu.MemorySpace.SMEM)

    # Advisory cost: dominant matmul flops, tanh/exp transcendentals, and the HBM
    # traffic (features f32 + W bf16 + param slab + output).  Lets XLA overlap the
    # W fetch / custom call with surrounding backbone work.
    bytes_accessed = (features.size * 4 + w_bf16.size * 2
                      + params.size * 4 + scalars.size * 4 + B * 4)
    cost = pl.CostEstimate(
        flops=2 * B * S * H * H + 6 * B * S * H,
        transcendentals=B * S * H + B * S,
        bytes_accessed=bytes_accessed,
    )

    return pl.pallas_call(
        attention_head_kernel,
        out_shape=jax.ShapeDtypeStruct((B, 1), jnp.float32),
        in_specs=[vmem, vmem, vmem, smem],
        out_specs=vmem,
        cost_estimate=cost,
    )(features, w_bf16, params, scalars)


def reference_forward(features, w_bf16, bw, v, bv, wl, bl):
    """Pure-JAX reference mirroring the torch AttentionHead + dropout(eval) + linear,
    using the same precision policy as the kernel (bf16 matmul, f32 accumulation)."""
    att = jnp.tanh(
        jnp.einsum("bsh,hk->bsk", features.astype(jnp.bfloat16), w_bf16,
                   preferred_element_type=jnp.float32) + bw)
    score = jnp.sum(att * v, axis=-1, keepdims=True) + bv
    attn = jax.nn.softmax(score, axis=1)
    ctx = jnp.sum(attn * features, axis=1)
    return jnp.sum(ctx * wl, axis=-1, keepdims=True) + bl


if __name__ == "__main__":
    B, S, H = 2, 8, 768  # hidden=768 as implied by AttentionHead(768, 768)

    key = jax.random.PRNGKey(0)
    k_feat, k_w, k_v, k_l = jax.random.split(key, 4)

    # "roberta" output features (synthetic stand-in for last_hidden_state)
    features = jax.random.normal(k_feat, (B, S, H), dtype=jnp.float32)

    # Parameter init matching nn.init.normal_(weight, 0, 0.01), bias = 0.
    # torch nn.Linear computes x @ weight.T + bias; transposed layouts stored directly.
    w_f32 = 0.01 * jax.random.normal(k_w, (H, H), dtype=jnp.float32)   # W.weight.T : (in, out)
    bw = jnp.zeros((1, H), dtype=jnp.float32)                          # W.bias
    v = 0.01 * jax.random.normal(k_v, (1, H), dtype=jnp.float32)       # V.weight : (1, H)
    bv = jnp.zeros((1, 1), dtype=jnp.float32)                          # V.bias
    wl = 0.01 * jax.random.normal(k_l, (1, H), dtype=jnp.float32)      # linear.weight : (1, H)
    bl = jnp.zeros((1, 1), dtype=jnp.float32)                          # linear.bias

    # Weights stored/DMA'd in bf16 (kernel is HBM-bound on the 768x768 weight); the
    # reference uses the same bf16 weights so the check compares identical parameters.
    w_bf16 = w_f32.astype(jnp.bfloat16)

    params = pack_params(bw, v, wl)
    scalars = jnp.stack([bv.reshape(()), bl.reshape(())])              # (2,) f32 -> SMEM

    out = model_head_forward(features, w_bf16, params, scalars)
    out = jax.block_until_ready(out)

    ref = reference_forward(features, w_bf16, bw, v, bv, wl, bl)
    assert out.shape == (B, 1)
    # Kernel and reference share the bf16-matmul precision policy; remaining delta is
    # accumulation order + approx reciprocal (~2^-12 relative), well under 5e-4.
    assert jnp.allclose(out, ref, atol=5e-4, rtol=5e-4), (out, ref)

    print("KERNEL_OK")
</pallas_src>

<mosaic_0001>
module attributes {stable_mosaic.version = 11 : i64} {
  func.func @attention_head_kernel(%arg0: memref<2x8x768xf32, #tpu.memory_space<vmem>>, %arg1: memref<768x768xbf16, #tpu.memory_space<vmem>>, %arg2: memref<8x768xf32, #tpu.memory_space<vmem>>, %arg3: memref<2xf32, #tpu.memory_space<smem>>, %arg4: memref<2x1xf32, #tpu.memory_space<vmem>>) attributes {dimension_semantics = [], scalar_prefetch = 0 : i64, scratch_operands = 0 : i64, tpu.core_type = #tpu.core_type<tc>} {
    %c0 = arith.constant 0 : index
    %c0_0 = arith.constant 0 : index
    %c0_1 = arith.constant 0 : index
    %0 = vector.load %arg0[%c0, %c0_0, %c0_1] : memref<2x8x768xf32, #tpu.memory_space<vmem>>, vector<2x8x768xf32>
    %c0_2 = arith.constant 0 : index
    %c0_3 = arith.constant 0 : index
    %1 = vector.load %arg2[%c0_2, %c0_3] : memref<8x768xf32, #tpu.memory_space<vmem>>, vector<1x768xf32>
    %c1 = arith.constant 1 : index
    %c0_4 = arith.constant 0 : index
    %2 = vector.load %arg2[%c1, %c0_4] : memref<8x768xf32, #tpu.memory_space<vmem>>, vector<1x768xf32>
    %c2 = arith.constant 2 : index
    %c0_5 = arith.constant 0 : index
    %3 = vector.load %arg2[%c2, %c0_5] : memref<8x768xf32, #tpu.memory_space<vmem>>, vector<1x768xf32>
    %c0_6 = arith.constant 0 : index
    %4 = memref.load %arg3[%c0_6] : memref<2xf32, #tpu.memory_space<smem>>
    %c1_7 = arith.constant 1 : index
    %5 = memref.load %arg3[%c1_7] : memref<2xf32, #tpu.memory_space<smem>>
    %6 = vector.shape_cast %0 : vector<2x8x768xf32> to vector<16x768xf32>
    %7 = arith.truncf %6 : vector<16x768xf32> to vector<16x768xbf16>
    %c0_8 = arith.constant 0 : index
    %c0_9 = arith.constant 0 : index
    %8 = vector.load %arg1[%c0_8, %c0_9] : memref<768x768xbf16, #tpu.memory_space<vmem>>, vector<768x768xbf16>
    %cst = arith.constant dense<0.000000e+00> : vector<16x768xf32>
    %9 = tpu.matmul %7, %8, %cst {dimension_numbers = #tpu.dot_dimension_numbers<[1], [0], [0], [1], [0, 0, 1, 1], [], []>} : vector<16x768xbf16>, vector<768x768xbf16>, vector<16x768xf32> -> vector<16x768xf32>
    %10 = vector.broadcast %1 : vector<1x768xf32> to vector<16x768xf32>
    %11 = arith.addf %9, %10 : vector<16x768xf32>
    %12 = math.tanh %11 : vector<16x768xf32>
    %13 = vector.broadcast %2 : vector<1x768xf32> to vector<16x768xf32>
    %14 = arith.mulf %12, %13 : vector<16x768xf32>
    %cst_10 = arith.constant dense<0.000000e+00> : vector<16xf32>
    %15 = vector.multi_reduction <add>, %14, %cst_10 [1] : vector<16x768xf32> to vector<16xf32>
    %16 = vector.shape_cast %15 : vector<16xf32> to vector<16x1xf32>
    %17 = vector.broadcast %4 : f32 to vector<16x1xf32>
    %18 = arith.addf %16, %17 : vector<16x1xf32>
    %19 = vector.shape_cast %18 : vector<16x1xf32> to vector<2x8x1xf32>
    %cst_11 = arith.constant dense<0xFF800000> : vector<2x1xf32>
    %20 = vector.multi_reduction <maximumf>, %19, %cst_11 [1] : vector<2x8x1xf32> to vector<2x1xf32>
    %21 = vector.shape_cast %20 : vector<2x1xf32> to vector<2x1x1xf32>
    %22 = vector.broadcast %21 : vector<2x1x1xf32> to vector<2x8x1xf32>
    %23 = arith.subf %19, %22 : vector<2x8x1xf32>
    %24 = math.exp %23 : vector<2x8x1xf32>
    %cst_12 = arith.constant dense<0.000000e+00> : vector<2x1xf32>
    %25 = vector.multi_reduction <add>, %24, %cst_12 [1] : vector<2x8x1xf32> to vector<2x1xf32>
    %26 = vector.shape_cast %25 : vector<2x1xf32> to vector<2x1x1xf32>
    %27 = tpu.reciprocal %26 {approx = true} : vector<2x1x1xf32> -> vector<2x1x1xf32>
    %28 = vector.broadcast %27 : vector<2x1x1xf32> to vector<2x8x1xf32>
    %29 = arith.mulf %24, %28 : vector<2x8x1xf32>
    %30 = vector.broadcast %29 : vector<2x8x1xf32> to vector<2x8x768xf32>
    %31 = arith.mulf %30, %0 : vector<2x8x768xf32>
    %cst_13 = arith.constant dense<0.000000e+00> : vector<2x768xf32>
    %32 = vector.multi_reduction <add>, %31, %cst_13 [1] : vector<2x8x768xf32> to vector<2x768xf32>
    %33 = vector.broadcast %3 : vector<1x768xf32> to vector<2x768xf32>
    %34 = arith.mulf %32, %33 : vector<2x768xf32>
    %cst_14 = arith.constant dense<0.000000e+00> : vector<2xf32>
    %35 = vector.multi_reduction <add>, %34, %cst_14 [1] : vector<2x768xf32> to vector<2xf32>
    %36 = vector.shape_cast %35 : vector<2xf32> to vector<2x1xf32>
    %37 = vector.broadcast %5 : f32 to vector<2x1xf32>
    %38 = arith.addf %36, %37 : vector<2x1xf32>
    %c0_15 = arith.constant 0 : index
    %c0_16 = arith.constant 0 : index
    %39 = vector.load %arg4[%c0_15, %c0_16] : memref<2x1xf32, #tpu.memory_space<vmem>>, vector<2x1xf32>
    tpu.vector_store %arg4[%c0_15, %c0_16], %38 {strides = array<i32>} : memref<2x1xf32, #tpu.memory_space<vmem>>, vector<2x1xf32>,
    return
  }
}

</mosaic_0001>

<llo_original>
// kernel: tpu_custom_call.1
$region0: #{tpu_custom_call.1}
  #allocation0 [shape = 'u32[]', space=smem, size = 0x4, offset = 0x4, fixed_abs, tag = 'smem constant byte address 0x4 - core index']
  #allocation1 [shape = 'u32[144,128]{1,0:T(1,128)}', space=vmem, size = 0x12000, scoped, tag = 'internal scratch']
  %s0 = inlined_call_operand.hbm [shape: f32[2,8,768], index: 0, kind: input, shape index: {}]
  %s1 = inlined_call_operand.hbm [shape: bf16[768,768], index: 1, kind: input, shape index: {}]
  %s2 = inlined_call_operand.hbm [shape: f32[8,768], index: 2, kind: input, shape index: {}]
  %s3 = inlined_call_operand.hbm [shape: f32[2], index: 3, kind: input, shape index: {}]
  %s4 = inlined_call_operand.vmem [shape: f32[2,1], index: 4, kind: output, shape index: {}]
  %s5 = sld [smem:[#allocation0]]
  $region42: #{tpu_custom_call.1} parent=0
    _
  %s7 = ssub.s32 1, %s5
  %s8 = scalar_select 0, %s7, %s5
  $region1: #{tpu_custom_call.1} parent=0
    #allocation2 [shape = 'u8[49152]{0}', space=vmem, size = 0xc000, scoped, tag = 'input window, operand 0, single buffered']
    #allocation3 [shape = 's32[1]{0}', space=sflag, size = 0x4, scoped, tag = 'scoped memory for tpu_custom_call.1']
    #allocation4 [shape = 's32[1]{0}', space=sflag, size = 0x4, scoped, tag = 'scoped memory for tpu_custom_call.1']
    #allocation5 [shape = 'u8[1179648]{0}', space=vmem, size = 0x120000, scoped, tag = 'input window, operand 1, single buffered']
    #allocation6 [shape = 's32[1]{0}', space=sflag, size = 0x4, scoped, tag = 'scoped memory for tpu_custom_call.1']
    #allocation7 [shape = 'u8[24576]{0}', space=vmem, size = 0x6000, scoped, tag = 'input window, operand 2, single buffered']
    #allocation8 [shape = 'u8[512]{0}', space=smem, size = 0x200, scoped, tag = 'input window, operand 3, single buffered']
    %9 = vsyncpa [#allocation3], 0
    %10 = vsyncpa [#allocation6], 0
    %11 = vsyncpa [#allocation4], 0
    // Predicated region
    $region2: #{tpu_custom_call.1} parent=1 // pred_check
      _
    $region3: #{tpu_custom_call.1} parent=1 // pred_check_branch
      %13 = sbr.rel (0) target = $region5
    $region4: #{tpu_custom_call.1} parent=1 // pred_region
      %s15 = ssub.s32 1536, 1536
      %16 = vsyncadd [#allocation3], %s15
      %s17 = sshll.u32 [#allocation2], 4
      %s18 = int_to_ptr.vmem [resolvable:$true] %s17
      %23 = dma.hbm_to_vmem [thread:$0]  %s0, 1536, %s18, [#allocation3], 768, 768, 48
    $region5: #{tpu_custom_call.1} parent=1 // pred_fallthru
      _
    // Predicated region
    $region6: #{tpu_custom_call.1} parent=1 // pred_check
      _
    $region7: #{tpu_custom_call.1} parent=1 // pred_check_branch
      %25 = sbr.rel (0) target = $region9
    $region8: #{tpu_custom_call.1} parent=1 // pred_region
      %s27 = ssub.s32 36864, 36864
      %28 = vsyncadd [#allocation6], %s27
      %s29 = sshll.u32 [#allocation5], 4
      %s30 = int_to_ptr.vmem [resolvable:$true] %s29
      %35 = dma.hbm_to_vmem [thread:$0]  %s1, 36864, %s30, [#allocation6], 384, 384, 24
    $region9: #{tpu_custom_call.1} parent=1 // pred_fallthru
      _
    // Predicated region
    $region10: #{tpu_custom_call.1} parent=1 // pred_check
      _
    $region11: #{tpu_custom_call.1} parent=1 // pred_check_branch
      %37 = sbr.rel (0) target = $region13
    $region12: #{tpu_custom_call.1} parent=1 // pred_region
      %s39 = ssub.s32 768, 768
      %40 = vsyncadd [#allocation6], %s39
      %s42 = sshll.u32 [#allocation7], 4
      %s43 = int_to_ptr.vmem [resolvable:$true] %s42
      %45 = dma.hbm_to_vmem [thread:$0]  %s2, 768, %s43, [#allocation6]
    $region13: #{tpu_custom_call.1} parent=1 // pred_fallthru
      _
    // Predicated region
    $region14: #{tpu_custom_call.1} parent=1 // pred_check
      _
    $region15: #{tpu_custom_call.1} parent=1 // pred_check_branch
      %47 = sbr.rel (0) target = $region17
    $region16: #{tpu_custom_call.1} parent=1 // pred_region
      %s49 = ssub.s32 16, 16
      %50 = vsyncadd [#allocation4], %s49
      %53 = dma.hbm_to_smem %s3, 16, [#allocation8], [#allocation4]
    $region17: #{tpu_custom_call.1} parent=1 // pred_fallthru
      _
    // Predicated region
    $region18: #{tpu_custom_call.1} parent=1 // pred_check
      _
    $region19: #{tpu_custom_call.1} parent=1 // pred_check_branch
      %55 = sbr.rel (0) target = $region21
    $region20: #{tpu_custom_call.1} parent=1 // pred_region
      %56 = dma.done [#allocation3], 1536
    $region21: #{tpu_custom_call.1} parent=1 // pred_fallthru
      _
    // Predicated region
    $region22: #{tpu_custom_call.1} parent=1 // pred_check
      _
    $region23: #{tpu_custom_call.1} parent=1 // pred_check_branch
      %58 = sbr.rel (0) target = $region25
    $region24: #{tpu_custom_call.1} parent=1 // pred_region
      %59 = dma.done [#allocation6], 36864
    $region25: #{tpu_custom_call.1} parent=1 // pred_fallthru
      _
    // Predicated region
    $region26: #{tpu_custom_call.1} parent=1 // pred_check
      _
    $region27: #{tpu_custom_call.1} parent=1 // pred_check_branch
      %61 = sbr.rel (0) target = $region29
    $region28: #{tpu_custom_call.1} parent=1 // pred_region
      %62 = dma.done [#allocation6], 768
    $region29: #{tpu_custom_call.1} parent=1 // pred_fallthru
      _
    // Predicated region
    $region30: #{tpu_custom_call.1} parent=1 // pred_check
      _
    $region31: #{tpu_custom_call.1} parent=1 // pred_check_branch
      %64 = sbr.rel (0) target = $region33
    $region32: #{tpu_custom_call.1} parent=1 // pred_region
      %65 = dma.done [#allocation4], 16
    $region33: #{tpu_custom_call.1} parent=1 // pred_fallthru
      _
    %66 = sfence
    %v67 = vld [vmem:[#allocation2] sm:$0xff]
    %v68 = vld [vmem:[#allocation2 + $0x8] sm:$0xff]
    %v69 = vld [vmem:[#allocation2 + $0x10] sm:$0xff]
    %v70 = vld [vmem:[#allocation2 + $0x18] sm:$0xff]
    %v71 = vld [vmem:[#allocation2 + $0x20] sm:$0xff]
    %v72 = vld [vmem:[#allocation2 + $0x28] sm:$0xff]
    %v73 = vld [vmem:[#allocation2 + $0x30] sm:$0xff]
    %v74 = vld [vmem:[#allocation2 + $0x38] sm:$0xff]
    %v75 = vld [vmem:[#allocation2 + $0x40] sm:$0xff]
    %v76 = vld [vmem:[#allocation2 + $0x48] sm:$0xff]
    %v77 = vld [vmem:[#allocation2 + $0x50] sm:$0xff]
    %v78 = vld [vmem:[#allocation2 + $0x58] sm:$0xff]
    %v79 = vld [vmem:[#allocation7] ss:$8 sm:$0xf]
    %v80 = vld [vmem:[#allocation7] ss:$8 sm:$0x30]
    %v81 = vor.u32 %v79, %v80
    %s82 = scalar_lea.vmem [#allocation7], 1
    %v83 = vld [vmem:[%s82] ss:$8 sm:$0xf]
    %v84 = vld [vmem:[%s82] ss:$8 sm:$0x30]
    %v85 = vor.u32 %v83, %v84
    %s86 = scalar_lea.vmem [#allocation7], 2
    %v87 = vld [vmem:[%s86] ss:$8 sm:$0xf]
    %v88 = vld [vmem:[%s86] ss:$8 sm:$0x30]
    %v89 = vor.u32 %v87, %v88
    %s90 = sld [smem:[#allocation8]]
    %s91 = sld [smem:[#allocation8 + $0x1]]
    %v92 = vpack.c.bf16 %v73, %v67
    %v93 = vpack.c.bf16 %v74, %v68
    %v94 = vpack.c.bf16 %v75, %v69
    %v95 = vpack.c.bf16 %v76, %v70
    %v96 = vpack.c.bf16 %v77, %v71
    %v97 = vpack.c.bf16 %v78, %v72
    %v98 = vld [vmem:[#allocation5] sm:$0xff]
    %v99 = vld [vmem:[#allocation5 + $0x8] sm:$0xff]
    %v100 = vld [vmem:[#allocation5 + $0x10] sm:$0xff]
    %v101 = vld [vmem:[#allocation5 + $0x18] sm:$0xff]
    %v102 = vld [vmem:[#allocation5 + $0x20] sm:$0xff]
    %v103 = vld [vmem:[#allocation5 + $0x28] sm:$0xff]
    %v104 = vld [vmem:[#allocation5 + $0x30] sm:$0xff]
    %v105 = vld [vmem:[#allocation5 + $0x38] sm:$0xff]
    %v106 = vld [vmem:[#allocation5 + $0x40] sm:$0xff]
    %v107 = vld [vmem:[#allocation5 + $0x48] sm:$0xff]
    %v108 = vld [vmem:[#allocation5 + $0x50] sm:$0xff]
    %v109 = vld [vmem:[#allocation5 + $0x58] sm:$0xff]
    %v110 = vld [vmem:[#allocation5 + $0x60] sm:$0xff]
    %v111 = vld [vmem:[#allocation5 + $0x68] sm:$0xff]
    %v112 = vld [vmem:[#allocation5 + $0x70] sm:$0xff]
    %v113 = vld [vmem:[#allocation5 + $0x78] sm:$0xff]
    %v114 = vld [vmem:[#allocation5 + $0x80] sm:$0xff]
    %v115 = vld [vmem:[#allocation5 + $0x88] sm:$0xff]
    %v116 = vld [vmem:[#allocation5 + $0x90] sm:$0xff]
    %v117 = vld [vmem:[#allocation5 + $0x98] sm:$0xff]
    %v118 = vld [vmem:[#allocation5 + $0xa0] sm:$0xff]
    %v119 = vld [vmem:[#allocation5 + $0xa8] sm:$0xff]
    %v120 = vld [vmem:[#allocation5 + $0xb0] sm:$0xff]
    %v121 = vld [vmem:[#allocation5 + $0xb8] sm:$0xff]
    %v122 = vld [vmem:[#allocation5 + $0xc0] sm:$0xff]
    %v123 = vld [vmem:[#allocation5 + $0xc8] sm:$0xff]
    %v124 = vld [vmem:[#allocation5 + $0xd0] sm:$0xff]
    %v125 = vld [vmem:[#allocation5 + $0xd8] sm:$0xff]
    %v126 = vld [vmem:[#allocation5 + $0xe0] sm:$0xff]
    %v127 = vld [vmem:[#allocation5 + $0xe8] sm:$0xff]
    %v128 = vld [vmem:[#allocation5 + $0xf0] sm:$0xff]
    %v129 = vld [vmem:[#allocation5 + $0xf8] sm:$0xff]
    %v130 = vld [vmem:[#allocation5 + $0x100] sm:$0xff]
    %v131 = vld [vmem:[#allocation5 + $0x108] sm:$0xff]
    %v132 = vld [vmem:[#allocation5 + $0x110] sm:$0xff]
    %v133 = vld [vmem:[#allocation5 + $0x118] sm:$0xff]
    %v134 = vld [vmem:[#allocation5 + $0x120] sm:$0xff]
    %v135 = vld [vmem:[#allocation5 + $0x128] sm:$0xff]
    %v136 = vld [vmem:[#allocation5 + $0x130] sm:$0xff]
    %v137 = vld [vmem:[#allocation5 + $0x138] sm:$0xff]
    %v138 = vld [vmem:[#allocation5 + $0x140] sm:$0xff]
    %v139 = vld [vmem:[#allocation5 + $0x148] sm:$0xff]
    %v140 = vld [vmem:[#allocation5 + $0x150] sm:$0xff]
    %v141 = vld [vmem:[#allocation5 + $0x158] sm:$0xff]
    %v142 = vld [vmem:[#allocation5 + $0x160] sm:$0xff]
    %v143 = vld [vmem:[#allocation5 + $0x168] sm:$0xff]
    %v144 = vld [vmem:[#allocation5 + $0x170] sm:$0xff]
    %v145 = vld [vmem:[#allocation5 + $0x178] sm:$0xff]
    %v146 = vld [vmem:[#allocation5 + $0x180] sm:$0xff]
    %v147 = vld [vmem:[#allocation5 + $0x188] sm:$0xff]
    %v148 = vld [vmem:[#allocation5 + $0x190] sm:$0xff]
    %v149 = vld [vmem:[#allocation5 + $0x198] sm:$0xff]
    %v150 = vld [vmem:[#allocation5 + $0x1a0] sm:$0xff]
    %v151 = vld [vmem:[#allocation5 + $0x1a8] sm:$0xff]
    %v152 = vld [vmem:[#allocation5 + $0x1b0] sm:$0xff]
    %v153 = vld [vmem:[#allocation5 + $0x1b8] sm:$0xff]
    %v154 = vld [vmem:[#allocation5 + $0x1c0] sm:$0xff]
    %v155 = vld [vmem:[#allocation5 + $0x1c8] sm:$0xff]
    %v156 = vld [vmem:[#allocation5 + $0x1d0] sm:$0xff]
    %v157 = vld [vmem:[#allocation5 + $0x1d8] sm:$0xff]
    %v158 = vld [vmem:[#allocation5 + $0x1e0] sm:$0xff]
    %v159 = vld [vmem:[#allocation5 + $0x1e8] sm:$0xff]
    %v160 = vld [vmem:[#allocation5 + $0x1f0] sm:$0xff]
    %v161 = vld [vmem:[#allocation5 + $0x1f8] sm:$0xff]
    %v162 = vld [vmem:[#allocation5 + $0x200] sm:$0xff]
    %v163 = vld [vmem:[#allocation5 + $0x208] sm:$0xff]
    %v164 = vld [vmem:[#allocation5 + $0x210] sm:$0xff]
    %v165 = vld [vmem:[#allocation5 + $0x218] sm:$0xff]
    %v166 = vld [vmem:[#allocation5 + $0x220] sm:$0xff]
    %v167 = vld [vmem:[#allocation5 + $0x228] sm:$0xff]
    %v168 = vld [vmem:[#allocation5 + $0x230] sm:$0xff]
    %v169 = vld [vmem:[#allocation5 + $0x238] sm:$0xff]
    %v170 = vld [vmem:[#allocation5 + $0x240] sm:$0xff]
    %v171 = vld [vmem:[#allocation5 + $0x248] sm:$0xff]
    %v172 = vld [vmem:[#allocation5 + $0x250] sm:$0xff]
    %v173 = vld [vmem:[#allocation5 + $0x258] sm:$0xff]
    %v174 = vld [vmem:[#allocation5 + $0x260] sm:$0xff]
    %v175 = vld [vmem:[#allocation5 + $0x268] sm:$0xff]
    %v176 = vld [vmem:[#allocation5 + $0x270] sm:$0xff]
    %v177 = vld [vmem:[#allocation5 + $0x278] sm:$0xff]
    %v178 = vld [vmem:[#allocation5 + $0x280] sm:$0xff]
    %v179 = vld [vmem:[#allocation5 + $0x288] sm:$0xff]
    %v180 = vld [vmem:[#allocation5 + $0x290] sm:$0xff]
    %v181 = vld [vmem:[#allocation5 + $0x298] sm:$0xff]
    %v182 = vld [vmem:[#allocation5 + $0x2a0] sm:$0xff]
    %v183 = vld [vmem:[#allocation5 + $0x2a8] sm:$0xff]
    %v184 = vld [vmem:[#allocation5 + $0x2b0] sm:$0xff]
    %v185 = vld [vmem:[#allocation5 + $0x2b8] sm:$0xff]
    %v186 = vld [vmem:[#allocation5 + $0x2c0] sm:$0xff]
    %v187 = vld [vmem:[#allocation5 + $0x2c8] sm:$0xff]
    %v188 = vld [vmem:[#allocation5 + $0x2d0] sm:$0xff]
    %v189 = vld [vmem:[#allocation5 + $0x2d8] sm:$0xff]
    %v190 = vld [vmem:[#allocation5 + $0x2e0] sm:$0xff]
    %v191 = vld [vmem:[#allocation5 + $0x2e8] sm:$0xff]
    %v192 = vld [vmem:[#allocation5 + $0x2f0] sm:$0xff]
    %v193 = vld [vmem:[#allocation5 + $0x2f8] sm:$0xff]
    %v194 = vld [vmem:[#allocation5 + $0x300] sm:$0xff]
    %v195 = vld [vmem:[#allocation5 + $0x308] sm:$0xff]
    %v196 = vld [vmem:[#allocation5 + $0x310] sm:$0xff]
    %v197 = vld [vmem:[#allocation5 + $0x318] sm:$0xff]
    %v198 = vld [vmem:[#allocation5 + $0x320] sm:$0xff]
    %v199 = vld [vmem:[#allocation5 + $0x328] sm:$0xff]
    %v200 = vld [vmem:[#allocation5 + $0x330] sm:$0xff]
    %v201 = vld [vmem:[#allocation5 + $0x338] sm:$0xff]
    %v202 = vld [vmem:[#allocation5 + $0x340] sm:$0xff]
    %v203 = vld [vmem:[#allocation5 + $0x348] sm:$0xff]
    %v204 = vld [vmem:[#allocation5 + $0x350] sm:$0xff]
    %v205 = vld [vmem:[#allocation5 + $0x358] sm:$0xff]
    %v206 = vld [vmem:[#allocation5 + $0x360] sm:$0xff]
    %v207 = vld [vmem:[#allocation5 + $0x368] sm:$0xff]
    %v208 = vld [vmem:[#allocation5 + $0x370] sm:$0xff]
    %v209 = vld [vmem:[#allocation5 + $0x378] sm:$0xff]
    %v210 = vld [vmem:[#allocation5 + $0x380] sm:$0xff]
    %v211 = vld [vmem:[#allocation5 + $0x388] sm:$0xff]
    %v212 = vld [vmem:[#allocation5 + $0x390] sm:$0xff]
    %v213 = vld [vmem:[#allocation5 + $0x398] sm:$0xff]
    %v214 = vld [vmem:[#allocation5 + $0x3a0] sm:$0xff]
    %v215 = vld [vmem:[#allocation5 + $0x3a8] sm:$0xff]
    %v216 = vld [vmem:[#allocation5 + $0x3b0] sm:$0xff]
    %v217 = vld [vmem:[#allocation5 + $0x3b8] sm:$0xff]
    %v218 = vld [vmem:[#allocation5 + $0x3c0] sm:$0xff]
    %v219 = vld [vmem:[#allocation5 + $0x3c8] sm:$0xff]
    %v220 = vld [vmem:[#allocation5 + $0x3d0] sm:$0xff]
    %v221 = vld [vmem:[#allocation5 + $0x3d8] sm:$0xff]
    %v222 = vld [vmem:[#allocation5 + $0x3e0] sm:$0xff]
    %v223 = vld [vmem:[#allocation5 + $0x3e8] sm:$0xff]
    %v224 = vld [vmem:[#allocation5 + $0x3f0] sm:$0xff]
    %v225 = vld [vmem:[#allocation5 + $0x3f8] sm:$0xff]
    %v226 = vld [vmem:[#allocation5 + $0x400] sm:$0xff]
    %v227 = vld [vmem:[#allocation5 + $0x408] sm:$0xff]
    %v228 = vld [vmem:[#allocation5 + $0x410] sm:$0xff]
    %v229 = vld [vmem:[#allocation5 + $0x418] sm:$0xff]
    %v230 = vld [vmem:[#allocation5 + $0x420] sm:$0xff]
    %v231 = vld [vmem:[#allocation5 + $0x428] sm:$0xff]
    %v232 = vld [vmem:[#allocation5 + $0x430] sm:$0xff]
    %v233 = vld [vmem:[#allocation5 + $0x438] sm:$0xff]
    %v234 = vld [vmem:[#allocation5 + $0x440] sm:$0xff]
    %v235 = vld [vmem:[#allocation5 + $0x448] sm:$0xff]
    %v236 = vld [vmem:[#allocation5 + $0x450] sm:$0xff]
    %v237 = vld [vmem:[#allocation5 + $0x458] sm:$0xff]
    %v238 = vld [vmem:[#allocation5 + $0x460] sm:$0xff]
    %v239 = vld [vmem:[#allocation5 + $0x468] sm:$0xff]
    %v240 = vld [vmem:[#allocation5 + $0x470] sm:$0xff]
    %v241 = vld [vmem:[#allocation5 + $0x478] sm:$0xff]
    %v242 = vld [vmem:[#allocation5 + $0x480] sm:$0xff]
    %v243 = vld [vmem:[#allocation5 + $0x488] sm:$0xff]
    %v244 = vld [vmem:[#allocation5 + $0x490] sm:$0xff]
    %v245 = vld [vmem:[#allocation5 + $0x498] sm:$0xff]
    %v246 = vld [vmem:[#allocation5 + $0x4a0] sm:$0xff]
    %v247 = vld [vmem:[#allocation5 + $0x4a8] sm:$0xff]
    %v248 = vld [vmem:[#allocation5 + $0x4b0] sm:$0xff]
    %v249 = vld [vmem:[#allocation5 + $0x4b8] sm:$0xff]
    %v250 = vld [vmem:[#allocation5 + $0x4c0] sm:$0xff]
    %v251 = vld [vmem:[#allocation5 + $0x4c8] sm:$0xff]
    %v252 = vld [vmem:[#allocation5 + $0x4d0] sm:$0xff]
    %v253 = vld [vmem:[#allocation5 + $0x4d8] sm:$0xff]
    %v254 = vld [vmem:[#allocation5 + $0x4e0] sm:$0xff]
    %v255 = vld [vmem:[#allocation5 + $0x4e8] sm:$0xff]
    %v256 = vld [vmem:[#allocation5 + $0x4f0] sm:$0xff]
    %v257 = vld [vmem:[#allocation5 + $0x4f8] sm:$0xff]
    %v258 = vld [vmem:[#allocation5 + $0x500] sm:$0xff]
    %v259 = vld [vmem:[#allocation5 + $0x508] sm:$0xff]
    %v260 = vld [vmem:[#allocation5 + $0x510] sm:$0xff]
    %v261 = vld [vmem:[#allocation5 + $0x518] sm:$0xff]
    %v262 = vld [vmem:[#allocation5 + $0x520] sm:$0xff]
    %v263 = vld [vmem:[#allocation5 + $0x528] sm:$0xff]
    %v264 = vld [vmem:[#allocation5 + $0x530] sm:$0xff]
    %v265 = vld [vmem:[#allocation5 + $0x538] sm:$0xff]
    %v266 = vld [vmem:[#allocation5 + $0x540] sm:$0xff]
    %v267 = vld [vmem:[#allocation5 + $0x548] sm:$0xff]
    %v268 = vld [vmem:[#allocation5 + $0x550] sm:$0xff]
    %v269 = vld [vmem:[#allocation5 + $0x558] sm:$0xff]
    %v270 = vld [vmem:[#allocation5 + $0x560] sm:$0xff]
    %v271 = vld [vmem:[#allocation5 + $0x568] sm:$0xff]
    %v272 = vld [vmem:[#allocation5 + $0x570] sm:$0xff]
    %v273 = vld [vmem:[#allocation5 + $0x578] sm:$0xff]
    %v274 = vld [vmem:[#allocation5 + $0x580] sm:$0xff]
    %v275 = vld [vmem:[#allocation5 + $0x588] sm:$0xff]
    %v276 = vld [vmem:[#allocation5 + $0x590] sm:$0xff]
    %v277 = vld [vmem:[#allocation5 + $0x598] sm:$0xff]
    %v278 = vld [vmem:[#allocation5 + $0x5a0] sm:$0xff]
    %v279 = vld [vmem:[#allocation5 + $0x5a8] sm:$0xff]
    %v280 = vld [vmem:[#allocation5 + $0x5b0] sm:$0xff]
    %v281 = vld [vmem:[#allocation5 + $0x5b8] sm:$0xff]
    %v282 = vld [vmem:[#allocation5 + $0x5c0] sm:$0xff]
    %v283 = vld [vmem:[#allocation5 + $0x5c8] sm:$0xff]
    %v284 = vld [vmem:[#allocation5 + $0x5d0] sm:$0xff]
    %v285 = vld [vmem:[#allocation5 + $0x5d8] sm:$0xff]
    %v286 = vld [vmem:[#allocation5 + $0x5e0] sm:$0xff]
    %v287 = vld [vmem:[#allocation5 + $0x5e8] sm:$0xff]
    %v288 = vld [vmem:[#allocation5 + $0x5f0] sm:$0xff]
    %v289 = vld [vmem:[#allocation5 + $0x5f8] sm:$0xff]
    %v290 = vld [vmem:[#allocation5 + $0x600] sm:$0xff]
    %v291 = vld [vmem:[#allocation5 + $0x608] sm:$0xff]
    %v292 = vld [vmem:[#allocation5 + $0x610] sm:$0xff]
    %v293 = vld [vmem:[#allocation5 + $0x618] sm:$0xff]
    %v294 = vld [vmem:[#allocation5 + $0x620] sm:$0xff]
    %v295 = vld [vmem:[#allocation5 + $0x628] sm:$0xff]
    %v296 = vld [vmem:[#allocation5 + $0x630] sm:$0xff]
    %v297 = vld [vmem:[#allocation5 + $0x638] sm:$0xff]
    %v298 = vld [vmem:[#allocation5 + $0x640] sm:$0xff]
    %v299 = vld [vmem:[#allocation5 + $0x648] sm:$0xff]
    %v300 = vld [vmem:[#allocation5 + $0x650] sm:$0xff]
    %v301 = vld [vmem:[#allocation5 + $0x658] sm:$0xff]
    %v302 = vld [vmem:[#allocation5 + $0x660] sm:$0xff]
    %v303 = vld [vmem:[#allocation5 + $0x668] sm:$0xff]
    %v304 = vld [vmem:[#allocation5 + $0x670] sm:$0xff]
    %v305 = vld [vmem:[#allocation5 + $0x678] sm:$0xff]
    %v306 = vld [vmem:[#allocation5 + $0x680] sm:$0xff]
    %v307 = vld [vmem:[#allocation5 + $0x688] sm:$0xff]
    %v308 = vld [vmem:[#allocation5 + $0x690] sm:$0xff]
    %v309 = vld [vmem:[#allocation5 + $0x698] sm:$0xff]
    %v310 = vld [vmem:[#allocation5 + $0x6a0] sm:$0xff]
    %v311 = vld [vmem:[#allocation5 + $0x6a8] sm:$0xff]
    %v312 = vld [vmem:[#allocation5 + $0x6b0] sm:$0xff]
    %v313 = vld [vmem:[#allocation5 + $0x6b8] sm:$0xff]
    %v314 = vld [vmem:[#allocation5 + $0x6c0] sm:$0xff]
    %v315 = vld [vmem:[#allocation5 + $0x6c8] sm:$0xff]
    %v316 = vld [vmem:[#allocation5 + $0x6d0] sm:$0xff]
    %v317 = vld [vmem:[#allocation5 + $0x6d8] sm:$0xff]
    %v318 = vld [vmem:[#allocation5 + $0x6e0] sm:$0xff]
    %v319 = vld [vmem:[#allocation5 + $0x6e8] sm:$0xff]
    %v320 = vld [vmem:[#allocation5 + $0x6f0] sm:$0xff]
    %v321 = vld [vmem:[#allocation5 + $0x6f8] sm:$0xff]
    %v322 = vld [vmem:[#allocation5 + $0x700] sm:$0xff]
    %v323 = vld [vmem:[#allocation5 + $0x708] sm:$0xff]
    %v324 = vld [vmem:[#allocation5 + $0x710] sm:$0xff]
    %v325 = vld [vmem:[#allocation5 + $0x718] sm:$0xff]
    %v326 = vld [vmem:[#allocation5 + $0x720] sm:$0xff]
    %v327 = vld [vmem:[#allocation5 + $0x728] sm:$0xff]
    %v328 = vld [vmem:[#allocation5 + $0x730] sm:$0xff]
    %v329 = vld [vmem:[#allocation5 + $0x738] sm:$0xff]
    %v330 = vld [vmem:[#allocation5 + $0x740] sm:$0xff]
    %v331 = vld [vmem:[#allocation5 + $0x748] sm:$0xff]
    %v332 = vld [vmem:[#allocation5 + $0x750] sm:$0xff]
    %v333 = vld [vmem:[#allocation5 + $0x758] sm:$0xff]
    %v334 = vld [vmem:[#allocation5 + $0x760] sm:$0xff]
    %v335 = vld [vmem:[#allocation5 + $0x768] sm:$0xff]
    %v336 = vld [vmem:[#allocation5 + $0x770] sm:$0xff]
    %v337 = vld [vmem:[#allocation5 + $0x778] sm:$0xff]
    %v338 = vld [vmem:[#allocation5 + $0x780] sm:$0xff]
    %v339 = vld [vmem:[#allocation5 + $0x788] sm:$0xff]
    %v340 = vld [vmem:[#allocation5 + $0x790] sm:$0xff]
    %v341 = vld [vmem:[#allocation5 + $0x798] sm:$0xff]
    %v342 = vld [vmem:[#allocation5 + $0x7a0] sm:$0xff]
    %v343 = vld [vmem:[#allocation5 + $0x7a8] sm:$0xff]
    %v344 = vld [vmem:[#allocation5 + $0x7b0] sm:$0xff]
    %v345 = vld [vmem:[#allocation5 + $0x7b8] sm:$0xff]
    %v346 = vld [vmem:[#allocation5 + $0x7c0] sm:$0xff]
    %v347 = vld [vmem:[#allocation5 + $0x7c8] sm:$0xff]
    %v348 = vld [vmem:[#allocation5 + $0x7d0] sm:$0xff]
    %v349 = vld [vmem:[#allocation5 + $0x7d8] sm:$0xff]
    %v350 = vld [vmem:[#allocation5 + $0x7e0] sm:$0xff]
    %v351 = vld [vmem:[#allocation5 + $0x7e8] sm:$0xff]
    %v352 = vld [vmem:[#allocation5 + $0x7f0] sm:$0xff]
    %v353 = vld [vmem:[#allocation5 + $0x7f8] sm:$0xff]
    %v354 = vld [vmem:[#allocation5 + $0x800] sm:$0xff]
    %v355 = vld [vmem:[#allocation5 + $0x808] sm:$0xff]
    %v356 = vld [vmem:[#allocation5 + $0x810] sm:$0xff]
    %v357 = vld [vmem:[#allocation5 + $0x818] sm:$0xff]
    %v358 = vld [vmem:[#allocation5 + $0x820] sm:$0xff]
    %v359 = vld [vmem:[#allocation5 + $0x828] sm:$0xff]
    %v360 = vld [vmem:[#allocation5 + $0x830] sm:$0xff]
    %v361 = vld [vmem:[#allocation5 + $0x838] sm:$0xff]
    %v362 = vld [vmem:[#allocation5 + $0x840] sm:$0xff]
    %v363 = vld [vmem:[#allocation5 + $0x848] sm:$0xff]
    %v364 = vld [vmem:[#allocation5 + $0x850] sm:$0xff]
    %v365 = vld [vmem:[#allocation5 + $0x858] sm:$0xff]
    %v366 = vld [vmem:[#allocation5 + $0x860] sm:$0xff]
    %v367 = vld [vmem:[#allocation5 + $0x868] sm:$0xff]
    %v368 = vld [vmem:[#allocation5 + $0x870] sm:$0xff]
    %v369 = vld [vmem:[#allocation5 + $0x878] sm:$0xff]
    %v370 = vld [vmem:[#allocation5 + $0x880] sm:$0xff]
    %v371 = vld [vmem:[#allocation5 + $0x888] sm:$0xff]
    %v372 = vld [vmem:[#allocation5 + $0x890] sm:$0xff]
    %v373 = vld [vmem:[#allocation5 + $0x898] sm:$0xff]
    %v374 = vld [vmem:[#allocation5 + $0x8a0] sm:$0xff]
    %v375 = vld [vmem:[#allocation5 + $0x8a8] sm:$0xff]
    %v376 = vld [vmem:[#allocation5 + $0x8b0] sm:$0xff]
    %v377 = vld [vmem:[#allocation5 + $0x8b8] sm:$0xff]
    %v378 = vld [vmem:[#allocation5 + $0x8c0] sm:$0xff]
    %v379 = vld [vmem:[#allocation5 + $0x8c8] sm:$0xff]
    %v380 = vld [vmem:[#allocation5 + $0x8d0] sm:$0xff]
    %v381 = vld [vmem:[#allocation5 + $0x8d8] sm:$0xff]
    %v382 = vld [vmem:[#allocation5 + $0x8e0] sm:$0xff]
    %v383 = vld [vmem:[#allocation5 + $0x8e8] sm:$0xff]
    %v384 = vld [vmem:[#allocation5 + $0x8f0] sm:$0xff]
    %v385 = vld [vmem:[#allocation5 + $0x8f8] sm:$0xff]
    %v387 = vlaneseq
    %v388 = vshrl.u32 %v387, 7
    %v389 = vsub.s32 0, %v388
    %v390 = vrot.slane %v81, %v389
    %v391 = vlaneseq
    %v392 = vshrl.u32 %v391, 7
    %v393 = vsub.s32 1, %v392
    %v394 = vrot.slane %v81, %v393
    %v395 = vlaneseq
    %v396 = vshrl.u32 %v395, 7
    %v397 = vsub.s32 2, %v396
    %v398 = vrot.slane %v81, %v397
    %v399 = vlaneseq
    %v400 = vshrl.u32 %v399, 7
    %v401 = vsub.s32 3, %v400
    %v402 = vrot.slane %v81, %v401
    %v403 = vlaneseq
    %v404 = vshrl.u32 %v403, 7
    %v405 = vsub.s32 4, %v404
    %v406 = vrot.slane %v81, %v405
    %v407 = vlaneseq
    %v408 = vshrl.u32 %v407, 7
    %v409 = vsub.s32 5, %v408
    %v410 = vrot.slane %v81, %v409
    %v705 = vunpack.c.l.b16 %v98
    %v706 = vunpack.c.h.b16 %v98
    %v707 = vunpack.c.l.b16 %v99
    %v708 = vunpack.c.h.b16 %v99
    %v709 = vunpack.c.l.b16 %v100
    %v710 = vunpack.c.h.b16 %v100
    %v711 = vunpack.c.l.b16 %v101
    %v712 = vunpack.c.h.b16 %v101
    %v713 = vunpack.c.l.b16 %v102
    %v714 = vunpack.c.h.b16 %v102
    %v715 = vunpack.c.l.b16 %v103
    %v716 = vunpack.c.h.b16 %v103
    %v717 = vunpack.c.l.b16 %v104
    %v718 = vunpack.c.h.b16 %v104
    %v719 = vunpack.c.l.b16 %v105
    %v720 = vunpack.c.h.b16 %v105
    %v721 = vunpack.c.l.b16 %v106
    %v722 = vunpack.c.h.b16 %v106
    %v723 = vunpack.c.l.b16 %v107
    %v724 = vunpack.c.h.b16 %v107
    %v725 = vunpack.c.l.b16 %v108
    %v726 = vunpack.c.h.b16 %v108
    %v727 = vunpack.c.l.b16 %v109
    %v728 = vunpack.c.h.b16 %v109
    %v729 = vunpack.c.l.b16 %v110
    %v730 = vunpack.c.h.b16 %v110
    %v731 = vunpack.c.l.b16 %v111
    %v732 = vunpack.c.h.b16 %v111
    %v733 = vunpack.c.l.b16 %v112
    %v734 = vunpack.c.h.b16 %v112
    %v735 = vunpack.c.l.b16 %v113
    %v736 = vunpack.c.h.b16 %v113
    %v737 = vunpack.c.l.b16 %v114
    %v738 = vunpack.c.h.b16 %v114
    %v739 = vunpack.c.l.b16 %v115
    %v740 = vunpack.c.h.b16 %v115
    %v741 = vunpack.c.l.b16 %v116
    %v742 = vunpack.c.h.b16 %v116
    %v743 = vunpack.c.l.b16 %v117
    %v744 = vunpack.c.h.b16 %v117
    %v745 = vunpack.c.l.b16 %v118
    %v746 = vunpack.c.h.b16 %v118
    %v747 = vunpack.c.l.b16 %v119
    %v748 = vunpack.c.h.b16 %v119
    %v749 = vunpack.c.l.b16 %v120
    %v750 = vunpack.c.h.b16 %v120
    %v751 = vunpack.c.l.b16 %v121
    %v752 = vunpack.c.h.b16 %v121
    %v753 = vunpack.c.l.b16 %v122
    %v754 = vunpack.c.h.b16 %v122
    %v755 = vunpack.c.l.b16 %v123
    %v756 = vunpack.c.h.b16 %v123
    %v757 = vunpack.c.l.b16 %v124
    %v758 = vunpack.c.h.b16 %v124
    %v759 = vunpack.c.l.b16 %v125
    %v760 = vunpack.c.h.b16 %v125
    %v761 = vunpack.c.l.b16 %v126
    %v762 = vunpack.c.h.b16 %v126
    %v763 = vunpack.c.l.b16 %v127
    %v764 = vunpack.c.h.b16 %v127
    %v765 = vunpack.c.l.b16 %v128
    %v766 = vunpack.c.h.b16 %v128
    %v767 = vunpack.c.l.b16 %v129
    %v768 = vunpack.c.h.b16 %v129
    %v769 = vunpack.c.l.b16 %v130
    %v770 = vunpack.c.h.b16 %v130
    %v771 = vunpack.c.l.b16 %v131
    %v772 = vunpack.c.h.b16 %v131
    %v773 = vunpack.c.l.b16 %v132
    %v774 = vunpack.c.h.b16 %v132
    %v775 = vunpack.c.l.b16 %v133
    %v776 = vunpack.c.h.b16 %v133
    %v777 = vunpack.c.l.b16 %v134
    %v778 = vunpack.c.h.b16 %v134
    %v779 = vunpack.c.l.b16 %v135
    %v780 = vunpack.c.h.b16 %v135
    %v781 = vunpack.c.l.b16 %v136
    %v782 = vunpack.c.h.b16 %v136
    %v783 = vunpack.c.l.b16 %v137
    %v784 = vunpack.c.h.b16 %v137
    %v785 = vunpack.c.l.b16 %v138
    %v786 = vunpack.c.h.b16 %v138
    %v787 = vunpack.c.l.b16 %v139
    %v788 = vunpack.c.h.b16 %v139
    %v789 = vunpack.c.l.b16 %v140
    %v790 = vunpack.c.h.b16 %v140
    %v791 = vunpack.c.l.b16 %v141
    %v792 = vunpack.c.h.b16 %v141
    %v793 = vunpack.c.l.b16 %v142
    %v794 = vunpack.c.h.b16 %v142
    %v795 = vunpack.c.l.b16 %v143
    %v796 = vunpack.c.h.b16 %v143
    %v797 = vunpack.c.l.b16 %v144
    %v798 = vunpack.c.h.b16 %v144
    %v799 = vunpack.c.l.b16 %v145
    %v800 = vunpack.c.h.b16 %v145
    %v801 = vunpack.c.l.b16 %v146
    %v802 = vunpack.c.h.b16 %v146
    %v803 = vunpack.c.l.b16 %v147
    %v804 = vunpack.c.h.b16 %v147
    %v805 = vunpack.c.l.b16 %v148
    %v806 = vunpack.c.h.b16 %v148
    %v807 = vunpack.c.l.b16 %v149
    %v808 = vunpack.c.h.b16 %v149
    %v809 = vunpack.c.l.b16 %v150
    %v810 = vunpack.c.h.b16 %v150
    %v811 = vunpack.c.l.b16 %v151
    %v812 = vunpack.c.h.b16 %v151
    %v813 = vunpack.c.l.b16 %v152
    %v814 = vunpack.c.h.b16 %v152
    %v815 = vunpack.c.l.b16 %v153
    %v816 = vunpack.c.h.b16 %v153
    %v817 = vunpack.c.l.b16 %v154
    %v818 = vunpack.c.h.b16 %v154
    %v819 = vunpack.c.l.b16 %v155
    %v820 = vunpack.c.h.b16 %v155
    %v821 = vunpack.c.l.b16 %v156
    %v822 = vunpack.c.h.b16 %v156
    %v823 = vunpack.c.l.b16 %v157
    %v824 = vunpack.c.h.b16 %v157
    %v825 = vunpack.c.l.b16 %v158
    %v826 = vunpack.c.h.b16 %v158
    %v827 = vunpack.c.l.b16 %v159
    %v828 = vunpack.c.h.b16 %v159
    %v829 = vunpack.c.l.b16 %v160
    %v830 = vunpack.c.h.b16 %v160
    %v831 = vunpack.c.l.b16 %v161
    %v832 = vunpack.c.h.b16 %v161
    %v833 = vunpack.c.l.b16 %v162
    %v834 = vunpack.c.h.b16 %v162
    %v835 = vunpack.c.l.b16 %v163
    %v836 = vunpack.c.h.b16 %v163
    %v837 = vunpack.c.l.b16 %v164
    %v838 = vunpack.c.h.b16 %v164
    %v839 = vunpack.c.l.b16 %v165
    %v840 = vunpack.c.h.b16 %v165
    %v841 = vunpack.c.l.b16 %v166
    %v842 = vunpack.c.h.b16 %v166
    %v843 = vunpack.c.l.b16 %v167
    %v844 = vunpack.c.h.b16 %v167
    %v845 = vunpack.c.l.b16 %v168
    %v846 = vunpack.c.h.b16 %v168
    %v847 = vunpack.c.l.b16 %v169
    %v848 = vunpack.c.h.b16 %v169
    %v849 = vunpack.c.l.b16 %v170
    %v850 = vunpack.c.h.b16 %v170
    %v851 = vunpack.c.l.b16 %v171
    %v852 = vunpack.c.h.b16 %v171
    %v853 = vunpack.c.l.b16 %v172
    %v854 = vunpack.c.h.b16 %v172
    %v855 = vunpack.c.l.b16 %v173
    %v856 = vunpack.c.h.b16 %v173
    %v857 = vunpack.c.l.b16 %v174
    %v858 = vunpack.c.h.b16 %v174
    %v859 = vunpack.c.l.b16 %v175
    %v860 = vunpack.c.h.b16 %v175
    %v861 = vunpack.c.l.b16 %v176
    %v862 = vunpack.c.h.b16 %v176
    %v863 = vunpack.c.l.b16 %v177
    %v864 = vunpack.c.h.b16 %v177
    %v865 = vunpack.c.l.b16 %v178
    %v866 = vunpack.c.h.b16 %v178
    %v867 = vunpack.c.l.b16 %v179
    %v868 = vunpack.c.h.b16 %v179
    %v869 = vunpack.c.l.b16 %v180
    %v870 = vunpack.c.h.b16 %v180
    %v871 = vunpack.c.l.b16 %v181
    %v872 = vunpack.c.h.b16 %v181
    %v873 = vunpack.c.l.b16 %v182
    %v874 = vunpack.c.h.b16 %v182
    %v875 = vunpack.c.l.b16 %v183
    %v876 = vunpack.c.h.b16 %v183
    %v877 = vunpack.c.l.b16 %v184
    %v878 = vunpack.c.h.b16 %v184
    %v879 = vunpack.c.l.b16 %v185
    %v880 = vunpack.c.h.b16 %v185
    %v881 = vunpack.c.l.b16 %v186
    %v882 = vunpack.c.h.b16 %v186
    %v883 = vunpack.c.l.b16 %v187
    %v884 = vunpack.c.h.b16 %v187
    %v885 = vunpack.c.l.b16 %v188
    %v886 = vunpack.c.h.b16 %v188
    %v887 = vunpack.c.l.b16 %v189
    %v888 = vunpack.c.h.b16 %v189
    %v889 = vunpack.c.l.b16 %v190
    %v890 = vunpack.c.h.b16 %v190
    %v891 = vunpack.c.l.b16 %v191
    %v892 = vunpack.c.h.b16 %v191
    %v893 = vunpack.c.l.b16 %v192
    %v894 = vunpack.c.h.b16 %v192
    %v895 = vunpack.c.l.b16 %v193
    %v896 = vunpack.c.h.b16 %v193
    %v897 = vunpack.c.l.b16 %v194
    %v898 = vunpack.c.h.b16 %v194
    %v899 = vunpack.c.l.b16 %v195
    %v900 = vunpack.c.h.b16 %v195
    %v901 = vunpack.c.l.b16 %v196
    %v902 = vunpack.c.h.b16 %v196
    %v903 = vunpack.c.l.b16 %v197
    %v904 = vunpack.c.h.b16 %v197
    %v905 = vunpack.c.l.b16 %v198
    %v906 = vunpack.c.h.b16 %v198
    %v907 = vunpack.c.l.b16 %v199
    %v908 = vunpack.c.h.b16 %v199
    %v909 = vunpack.c.l.b16 %v200
    %v910 = vunpack.c.h.b16 %v200
    %v911 = vunpack.c.l.b16 %v201
    %v912 = vunpack.c.h.b16 %v201
    %v913 = vunpack.c.l.b16 %v202
    %v914 = vunpack.c.h.b16 %v202
    %v915 = vunpack.c.l.b16 %v203
    %v916 = vunpack.c.h.b16 %v203
    %v917 = vunpack.c.l.b16 %v204
    %v918 = vunpack.c.h.b16 %v204
    %v919 = vunpack.c.l.b16 %v205
    %v920 = vunpack.c.h.b16 %v205
    %v921 = vunpack.c.l.b16 %v206
    %v922 = vunpack.c.h.b16 %v206
    %v923 = vunpack.c.l.b16 %v207
    %v924 = vunpack.c.h.b16 %v207
    %v925 = vunpack.c.l.b16 %v208
    %v926 = vunpack.c.h.b16 %v208
    %v927 = vunpack.c.l.b16 %v209
    %v928 = vunpack.c.h.b16 %v209
    %v929 = vunpack.c.l.b16 %v210
    %v930 = vunpack.c.h.b16 %v210
    %v931 = vunpack.c.l.b16 %v211
    %v932 = vunpack.c.h.b16 %v211
    %v933 = vunpack.c.l.b16 %v212
    %v934 = vunpack.c.h.b16 %v212
    %v935 = vunpack.c.l.b16 %v213
    %v936 = vunpack.c.h.b16 %v213
    %v937 = vunpack.c.l.b16 %v214
    %v938 = vunpack.c.h.b16 %v214
    %v939 = vunpack.c.l.b16 %v215
    %v940 = vunpack.c.h.b16 %v215
    %v941 = vunpack.c.l.b16 %v216
    %v942 = vunpack.c.h.b16 %v216
    %v943 = vunpack.c.l.b16 %v217
    %v944 = vunpack.c.h.b16 %v217
    %v945 = vunpack.c.l.b16 %v218
    %v946 = vunpack.c.h.b16 %v218
    %v947 = vunpack.c.l.b16 %v219
    %v948 = vunpack.c.h.b16 %v219
    %v949 = vunpack.c.l.b16 %v220
    %v950 = vunpack.c.h.b16 %v220
    %v951 = vunpack.c.l.b16 %v221
    %v952 = vunpack.c.h.b16 %v221
    %v953 = vunpack.c.l.b16 %v222
    %v954 = vunpack.c.h.b16 %v222
    %v955 = vunpack.c.l.b16 %v223
    %v956 = vunpack.c.h.b16 %v223
    %v957 = vunpack.c.l.b16 %v224
    %v958 = vunpack.c.h.b16 %v224
    %v959 = vunpack.c.l.b16 %v225
    %v960 = vunpack.c.h.b16 %v225
    %v961 = vunpack.c.l.b16 %v226
    %v962 = vunpack.c.h.b16 %v226
    %v963 = vunpack.c.l.b16 %v227
    %v964 = vunpack.c.h.b16 %v227
    %v965 = vunpack.c.l.b16 %v228
    %v966 = vunpack.c.h.b16 %v228
    %v967 = vunpack.c.l.b16 %v229
    %v968 = vunpack.c.h.b16 %v229
    %v969 = vunpack.c.l.b16 %v230
    %v970 = vunpack.c.h.b16 %v230
    %v971 = vunpack.c.l.b16 %v231
    %v972 = vunpack.c.h.b16 %v231
    %v973 = vunpack.c.l.b16 %v232
    %v974 = vunpack.c.h.b16 %v232
    %v975 = vunpack.c.l.b16 %v233
    %v976 = vunpack.c.h.b16 %v233
    %v977 = vunpack.c.l.b16 %v234
    %v978 = vunpack.c.h.b16 %v234
    %v979 = vunpack.c.l.b16 %v235
    %v980 = vunpack.c.h.b16 %v235
    %v981 = vunpack.c.l.b16 %v236
    %v982 = vunpack.c.h.b16 %v236
    %v983 = vunpack.c.l.b16 %v237
    %v984 = vunpack.c.h.b16 %v237
    %v985 = vunpack.c.l.b16 %v238
    %v986 = vunpack.c.h.b16 %v238
    %v987 = vunpack.c.l.b16 %v239
    %v988 = vunpack.c.h.b16 %v239
    %v989 = vunpack.c.l.b16 %v240
    %v990 = vunpack.c.h.b16 %v240
    %v991 = vunpack.c.l.b16 %v241
    %v992 = vunpack.c.h.b16 %v241
    %v993 = vunpack.c.l.b16 %v242
    %v994 = vunpack.c.h.b16 %v242
    %v995 = vunpack.c.l.b16 %v243
    %v996 = vunpack.c.h.b16 %v243
    %v997 = vunpack.c.l.b16 %v244
    %v998 = vunpack.c.h.b16 %v244
    %v999 = vunpack.c.l.b16 %v245
    %v1000 = vunpack.c.h.b16 %v245
    %v1001 = vunpack.c.l.b16 %v246
    %v1002 = vunpack.c.h.b16 %v246
    %v1003 = vunpack.c.l.b16 %v247
    %v1004 = vunpack.c.h.b16 %v247
    %v1005 = vunpack.c.l.b16 %v248
    %v1006 = vunpack.c.h.b16 %v248
    %v1007 = vunpack.c.l.b16 %v249
    %v1008 = vunpack.c.h.b16 %v249
    %v1009 = vunpack.c.l.b16 %v250
    %v1010 = vunpack.c.h.b16 %v250
    %v1011 = vunpack.c.l.b16 %v251
    %v1012 = vunpack.c.h.b16 %v251
    %v1013 = vunpack.c.l.b16 %v252
    %v1014 = vunpack.c.h.b16 %v252
    %v1015 = vunpack.c.l.b16 %v253
    %v1016 = vunpack.c.h.b16 %v253
    %v1017 = vunpack.c.l.b16 %v254
    %v1018 = vunpack.c.h.b16 %v254
    %v1019 = vunpack.c.l.b16 %v255
    %v1020 = vunpack.c.h.b16 %v255
    %v1021 = vunpack.c.l.b16 %v256
    %v1022 = vunpack.c.h.b16 %v256
    %v1023 = vunpack.c.l.b16 %v257
    %v1024 = vunpack.c.h.b16 %v257
    %v1025 = vunpack.c.l.b16 %v258
    %v1026 = vunpack.c.h.b16 %v258
    %v1027 = vunpack.c.l.b16 %v259
    %v1028 = vunpack.c.h.b16 %v259
    %v1029 = vunpack.c.l.b16 %v260
    %v1030 = vunpack.c.h.b16 %v260
    %v1031 = vunpack.c.l.b16 %v261
    %v1032 = vunpack.c.h.b16 %v261
    %v1033 = vunpack.c.l.b16 %v262
    %v1034 = vunpack.c.h.b16 %v262
    %v1035 = vunpack.c.l.b16 %v263
    %v1036 = vunpack.c.h.b16 %v263
    %v1037 = vunpack.c.l.b16 %v264
    %v1038 = vunpack.c.h.b16 %v264
    %v1039 = vunpack.c.l.b16 %v265
    %v1040 = vunpack.c.h.b16 %v265
    %v1041 = vunpack.c.l.b16 %v266
    %v1042 = vunpack.c.h.b16 %v266
    %v1043 = vunpack.c.l.b16 %v267
    %v1044 = vunpack.c.h.b16 %v267
    %v1045 = vunpack.c.l.b16 %v268
    %v1046 = vunpack.c.h.b16 %v268
    %v1047 = vunpack.c.l.b16 %v269
    %v1048 = vunpack.c.h.b16 %v269
    %v1049 = vunpack.c.l.b16 %v270
    %v1050 = vunpack.c.h.b16 %v270
    %v1051 = vunpack.c.l.b16 %v271
    %v1052 = vunpack.c.h.b16 %v271
    %v1053 = vunpack.c.l.b16 %v272
    %v1054 = vunpack.c.h.b16 %v272
    %v1055 = vunpack.c.l.b16 %v273
    %v1056 = vunpack.c.h.b16 %v273
    %v1057 = vunpack.c.l.b16 %v274
    %v1058 = vunpack.c.h.b16 %v274
    %v1059 = vunpack.c.l.b16 %v275
    %v1060 = vunpack.c.h.b16 %v275
    %v1061 = vunpack.c.l.b16 %v276
    %v1062 = vunpack.c.h.b16 %v276
    %v1063 = vunpack.c.l.b16 %v277
    %v1064 = vunpack.c.h.b16 %v277
    %v1065 = vunpack.c.l.b16 %v278
    %v1066 = vunpack.c.h.b16 %v278
    %v1067 = vunpack.c.l.b16 %v279
    %v1068 = vunpack.c.h.b16 %v279
    %v1069 = vunpack.c.l.b16 %v280
    %v1070 = vunpack.c.h.b16 %v280
    %v1071 = vunpack.c.l.b16 %v281
    %v1072 = vunpack.c.h.b16 %v281
    %v1073 = vunpack.c.l.b16 %v282
    %v1074 = vunpack.c.h.b16 %v282
    %v1075 = vunpack.c.l.b16 %v283
    %v1076 = vunpack.c.h.b16 %v283
    %v1077 = vunpack.c.l.b16 %v284
    %v1078 = vunpack.c.h.b16 %v284
    %v1079 = vunpack.c.l.b16 %v285
    %v1080 = vunpack.c.h.b16 %v285
    %v1081 = vunpack.c.l.b16 %v286
    %v1082 = vunpack.c.h.b16 %v286
    %v1083 = vunpack.c.l.b16 %v287
    %v1084 = vunpack.c.h.b16 %v287
    %v1085 = vunpack.c.l.b16 %v288
    %v1086 = vunpack.c.h.b16 %v288
    %v1087 = vunpack.c.l.b16 %v289
    %v1088 = vunpack.c.h.b16 %v289
    %v1089 = vunpack.c.l.b16 %v290
    %v1090 = vunpack.c.h.b16 %v290
    %v1091 = vunpack.c.l.b16 %v291
    %v1092 = vunpack.c.h.b16 %v291
    %v1093 = vunpack.c.l.b16 %v292
    %v1094 = vunpack.c.h.b16 %v292
    %v1095 = vunpack.c.l.b16 %v293
    %v1096 = vunpack.c.h.b16 %v293
    %v1097 = vunpack.c.l.b16 %v294
    %v1098 = vunpack.c.h.b16 %v294
    %v1099 = vunpack.c.l.b16 %v295
    %v1100 = vunpack.c.h.b16 %v295
    %v1101 = vunpack.c.l.b16 %v296
    %v1102 = vunpack.c.h.b16 %v296
    %v1103 = vunpack.c.l.b16 %v297
    %v1104 = vunpack.c.h.b16 %v297
    %v1105 = vunpack.c.l.b16 %v298
    %v1106 = vunpack.c.h.b16 %v298
    %v1107 = vunpack.c.l.b16 %v299
    %v1108 = vunpack.c.h.b16 %v299
    %v1109 = vunpack.c.l.b16 %v300
    %v1110 = vunpack.c.h.b16 %v300
    %v1111 = vunpack.c.l.b16 %v301
    %v1112 = vunpack.c.h.b16 %v301
    %v1113 = vunpack.c.l.b16 %v302
    %v1114 = vunpack.c.h.b16 %v302
    %v1115 = vunpack.c.l.b16 %v303
    %v1116 = vunpack.c.h.b16 %v303
    %v1117 = vunpack.c.l.b16 %v304
    %v1118 = vunpack.c.h.b16 %v304
    %v1119 = vunpack.c.l.b16 %v305
    %v1120 = vunpack.c.h.b16 %v305
    %v1121 = vunpack.c.l.b16 %v306
    %v1122 = vunpack.c.h.b16 %v306
    %v1123 = vunpack.c.l.b16 %v307
    %v1124 = vunpack.c.h.b16 %v307
    %v1125 = vunpack.c.l.b16 %v308
    %v1126 = vunpack.c.h.b16 %v308
    %v1127 = vunpack.c.l.b16 %v309
    %v1128 = vunpack.c.h.b16 %v309
    %v1129 = vunpack.c.l.b16 %v310
    %v1130 = vunpack.c.h.b16 %v310
    %v1131 = vunpack.c.l.b16 %v311
    %v1132 = vunpack.c.h.b16 %v311
    %v1133 = vunpack.c.l.b16 %v312
    %v1134 = vunpack.c.h.b16 %v312
    %v1135 = vunpack.c.l.b16 %v313
    %v1136 = vunpack.c.h.b16 %v313
    %v1137 = vunpack.c.l.b16 %v314
    %v1138 = vunpack.c.h.b16 %v314
    %v1139 = vunpack.c.l.b16 %v315
    %v1140 = vunpack.c.h.b16 %v315
    %v1141 = vunpack.c.l.b16 %v316
    %v1142 = vunpack.c.h.b16 %v316
    %v1143 = vunpack.c.l.b16 %v317
    %v1144 = vunpack.c.h.b16 %v317
    %v1145 = vunpack.c.l.b16 %v318
    %v1146 = vunpack.c.h.b16 %v318
    %v1147 = vunpack.c.l.b16 %v319
    %v1148 = vunpack.c.h.b16 %v319
    %v1149 = vunpack.c.l.b16 %v320
    %v1150 = vunpack.c.h.b16 %v320
    %v1151 = vunpack.c.l.b16 %v321
    %v1152 = vunpack.c.h.b16 %v321
    %v1153 = vunpack.c.l.b16 %v322
    %v1154 = vunpack.c.h.b16 %v322
    %v1155 = vunpack.c.l.b16 %v323
    %v1156 = vunpack.c.h.b16 %v323
    %v1157 = vunpack.c.l.b16 %v324
    %v1158 = vunpack.c.h.b16 %v324
    %v1159 = vunpack.c.l.b16 %v325
    %v1160 = vunpack.c.h.b16 %v325
    %v1161 = vunpack.c.l.b16 %v326
    %v1162 = vunpack.c.h.b16 %v326
    %v1163 = vunpack.c.l.b16 %v327
    %v1164 = vunpack.c.h.b16 %v327
    %v1165 = vunpack.c.l.b16 %v328
    %v1166 = vunpack.c.h.b16 %v328
    %v1167 = vunpack.c.l.b16 %v329
    %v1168 = vunpack.c.h.b16 %v329
    %v1169 = vunpack.c.l.b16 %v330
    %v1170 = vunpack.c.h.b16 %v330
    %v1171 = vunpack.c.l.b16 %v331
    %v1172 = vunpack.c.h.b16 %v331
    %v1173 = vunpack.c.l.b16 %v332
    %v1174 = vunpack.c.h.b16 %v332
    %v1175 = vunpack.c.l.b16 %v333
    %v1176 = vunpack.c.h.b16 %v333
    %v1177 = vunpack.c.l.b16 %v334
    %v1178 = vunpack.c.h.b16 %v334
    %v1179 = vunpack.c.l.b16 %v335
    %v1180 = vunpack.c.h.b16 %v335
    %v1181 = vunpack.c.l.b16 %v336
    %v1182 = vunpack.c.h.b16 %v336
    %v1183 = vunpack.c.l.b16 %v337
    %v1184 = vunpack.c.h.b16 %v337
    %v1185 = vunpack.c.l.b16 %v338
    %v1186 = vunpack.c.h.b16 %v338
    %v1187 = vunpack.c.l.b16 %v339
    %v1188 = vunpack.c.h.b16 %v339
    %v1189 = vunpack.c.l.b16 %v340
    %v1190 = vunpack.c.h.b16 %v340
    %v1191 = vunpack.c.l.b16 %v341
    %v1192 = vunpack.c.h.b16 %v341
    %v1193 = vunpack.c.l.b16 %v342
    %v1194 = vunpack.c.h.b16 %v342
    %v1195 = vunpack.c.l.b16 %v343
    %v1196 = vunpack.c.h.b16 %v343
    %v1197 = vunpack.c.l.b16 %v344
    %v1198 = vunpack.c.h.b16 %v344
    %v1199 = vunpack.c.l.b16 %v345
    %v1200 = vunpack.c.h.b16 %v345
    %v1201 = vunpack.c.l.b16 %v346
    %v1202 = vunpack.c.h.b16 %v346
    %v1203 = vunpack.c.l.b16 %v347
    %v1204 = vunpack.c.h.b16 %v347
    %v1205 = vunpack.c.l.b16 %v348
    %v1206 = vunpack.c.h.b16 %v348
    %v1207 = vunpack.c.l.b16 %v349
    %v1208 = vunpack.c.h.b16 %v349
    %v1209 = vunpack.c.l.b16 %v350
    %v1210 = vunpack.c.h.b16 %v350
    %v1211 = vunpack.c.l.b16 %v351
    %v1212 = vunpack.c.h.b16 %v351
    %v1213 = vunpack.c.l.b16 %v352
    %v1214 = vunpack.c.h.b16 %v352
    %v1215 = vunpack.c.l.b16 %v353
    %v1216 = vunpack.c.h.b16 %v353
    %v1217 = vunpack.c.l.b16 %v354
    %v1218 = vunpack.c.h.b16 %v354
    %v1219 = vunpack.c.l.b16 %v355
    %v1220 = vunpack.c.h.b16 %v355
    %v1221 = vunpack.c.l.b16 %v356
    %v1222 = vunpack.c.h.b16 %v356
    %v1223 = vunpack.c.l.b16 %v357
    %v1224 = vunpack.c.h.b16 %v357
    %v1225 = vunpack.c.l.b16 %v358
    %v1226 = vunpack.c.h.b16 %v358
    %v1227 = vunpack.c.l.b16 %v359
    %v1228 = vunpack.c.h.b16 %v359
    %v1229 = vunpack.c.l.b16 %v360
    %v1230 = vunpack.c.h.b16 %v360
    %v1231 = vunpack.c.l.b16 %v361
    %v1232 = vunpack.c.h.b16 %v361
    %v1233 = vunpack.c.l.b16 %v362
    %v1234 = vunpack.c.h.b16 %v362
    %v1235 = vunpack.c.l.b16 %v363
    %v1236 = vunpack.c.h.b16 %v363
    %v1237 = vunpack.c.l.b16 %v364
    %v1238 = vunpack.c.h.b16 %v364
    %v1239 = vunpack.c.l.b16 %v365
    %v1240 = vunpack.c.h.b16 %v365
    %v1241 = vunpack.c.l.b16 %v366
    %v1242 = vunpack.c.h.b16 %v366
    %v1243 = vunpack.c.l.b16 %v367
    %v1244 = vunpack.c.h.b16 %v367
    %v1245 = vunpack.c.l.b16 %v368
    %v1246 = vunpack.c.h.b16 %v368
    %v1247 = vunpack.c.l.b16 %v369
    %v1248 = vunpack.c.h.b16 %v369
    %v1249 = vunpack.c.l.b16 %v370
    %v1250 = vunpack.c.h.b16 %v370
    %v1251 = vunpack.c.l.b16 %v371
    %v1252 = vunpack.c.h.b16 %v371
    %v1253 = vunpack.c.l.b16 %v372
    %v1254 = vunpack.c.h.b16 %v372
    %v1255 = vunpack.c.l.b16 %v373
    %v1256 = vunpack.c.h.b16 %v373
    %v1257 = vunpack.c.l.b16 %v374
    %v1258 = vunpack.c.h.b16 %v374
    %v1259 = vunpack.c.l.b16 %v375
    %v1260 = vunpack.c.h.b16 %v375
    %v1261 = vunpack.c.l.b16 %v376
    %v1262 = vunpack.c.h.b16 %v376
    %v1263 = vunpack.c.l.b16 %v377
    %v1264 = vunpack.c.h.b16 %v377
    %v1265 = vunpack.c.l.b16 %v378
    %v1266 = vunpack.c.h.b16 %v378
    %v1267 = vunpack.c.l.b16 %v379
    %v1268 = vunpack.c.h.b16 %v379
    %v1269 = vunpack.c.l.b16 %v380
    %v1270 = vunpack.c.h.b16 %v380
    %v1271 = vunpack.c.l.b16 %v381
    %v1272 = vunpack.c.h.b16 %v381
    %v1273 = vunpack.c.l.b16 %v382
    %v1274 = vunpack.c.h.b16 %v382
    %v1275 = vunpack.c.l.b16 %v383
    %v1276 = vunpack.c.h.b16 %v383
    %v1277 = vunpack.c.l.b16 %v384
    %v1278 = vunpack.c.h.b16 %v384
    %v1279 = vunpack.c.l.b16 %v385
    %v1280 = vunpack.c.h.b16 %v385
    %v1281 = vpack.c.b16 %v711, %v705
    %v1282 = vpack.c.b16 %v712, %v706
    %v1283 = vpack.c.b16 %v713, %v707
    %v1284 = vpack.c.b16 %v714, %v708
    %v1285 = vpack.c.b16 %v715, %v709
    %v1286 = vpack.c.b16 %v716, %v710
    %v1287 = vpack.c.b16 %v723, %v717
    %v1288 = vpack.c.b16 %v724, %v718
    %v1289 = vpack.c.b16 %v725, %v719
    %v1290 = vpack.c.b16 %v726, %v720
    %v1291 = vpack.c.b16 %v727, %v721
    %v1292 = vpack.c.b16 %v728, %v722
    %v1293 = vpack.c.b16 %v735, %v729
    %v1294 = vpack.c.b16 %v736, %v730
    %v1295 = vpack.c.b16 %v737, %v731
    %v1296 = vpack.c.b16 %v738, %v732
    %v1297 = vpack.c.b16 %v739, %v733
    %v1298 = vpack.c.b16 %v740, %v734
    %v1299 = vpack.c.b16 %v747, %v741
    %v1300 = vpack.c.b16 %v748, %v742
    %v1301 = vpack.c.b16 %v749, %v743
    %v1302 = vpack.c.b16 %v750, %v744
    %v1303 = vpack.c.b16 %v751, %v745
    %v1304 = vpack.c.b16 %v752, %v746
    %v1305 = vpack.c.b16 %v759, %v753
    %v1306 = vpack.c.b16 %v760, %v754
    %v1307 = vpack.c.b16 %v761, %v755
    %v1308 = vpack.c.b16 %v762, %v756
    %v1309 = vpack.c.b16 %v763, %v757
    %v1310 = vpack.c.b16 %v764, %v758
    %v1311 = vpack.c.b16 %v771, %v765
    %v1312 = vpack.c.b16 %v772, %v766
    %v1313 = vpack.c.b16 %v773, %v767
    %v1314 = vpack.c.b16 %v774, %v768
    %v1315 = vpack.c.b16 %v775, %v769
    %v1316 = vpack.c.b16 %v776, %v770
    %v1317 = vpack.c.b16 %v783, %v777
    %v1318 = vpack.c.b16 %v784, %v778
    %v1319 = vpack.c.b16 %v785, %v779
    %v1320 = vpack.c.b16 %v786, %v780
    %v1321 = vpack.c.b16 %v787, %v781
    %v1322 = vpack.c.b16 %v788, %v782
    %v1323 = vpack.c.b16 %v795, %v789
    %v1324 = vpack.c.b16 %v796, %v790
    %v1325 = vpack.c.b16 %v797, %v791
    %v1326 = vpack.c.b16 %v798, %v792
    %v1327 = vpack.c.b16 %v799, %v793
    %v1328 = vpack.c.b16 %v800, %v794
    %v1329 = vpack.c.b16 %v807, %v801
    %v1330 = vpack.c.b16 %v808, %v802
    %v1331 = vpack.c.b16 %v809, %v803
    %v1332 = vpack.c.b16 %v810, %v804
    %v1333 = vpack.c.b16 %v811, %v805
    %v1334 = vpack.c.b16 %v812, %v806
    %v1335 = vpack.c.b16 %v819, %v813
    %v1336 = vpack.c.b16 %v820, %v814
    %v1337 = vpack.c.b16 %v821, %v815
    %v1338 = vpack.c.b16 %v822, %v816
    %v1339 = vpack.c.b16 %v823, %v817
    %v1340 = vpack.c.b16 %v824, %v818
    %v1341 = vpack.c.b16 %v831, %v825
    %v1342 = vpack.c.b16 %v832, %v826
    %v1343 = vpack.c.b16 %v833, %v827
    %v1344 = vpack.c.b16 %v834, %v828
    %v1345 = vpack.c.b16 %v835, %v829
    %v1346 = vpack.c.b16 %v836, %v830
    %v1347 = vpack.c.b16 %v843, %v837
    %v1348 = vpack.c.b16 %v844, %v838
    %v1349 = vpack.c.b16 %v845, %v839
    %v1350 = vpack.c.b16 %v846, %v840
    %v1351 = vpack.c.b16 %v847, %v841
    %v1352 = vpack.c.b16 %v848, %v842
    %v1353 = vpack.c.b16 %v855, %v849
    %v1354 = vpack.c.b16 %v856, %v850
    %v1355 = vpack.c.b16 %v857, %v851
    %v1356 = vpack.c.b16 %v858, %v852
    %v1357 = vpack.c.b16 %v859, %v853
    %v1358 = vpack.c.b16 %v860, %v854
    %v1359 = vpack.c.b16 %v867, %v861
    %v1360 = vpack.c.b16 %v868, %v862
    %v1361 = vpack.c.b16 %v869, %v863
    %v1362 = vpack.c.b16 %v870, %v864
    %v1363 = vpack.c.b16 %v871, %v865
    %v1364 = vpack.c.b16 %v872, %v866
    %v1365 = vpack.c.b16 %v879, %v873
    %v1366 = vpack.c.b16 %v880, %v874
    %v1367 = vpack.c.b16 %v881, %v875
    %v1368 = vpack.c.b16 %v882, %v876
    %v1369 = vpack.c.b16 %v883, %v877
    %v1370 = vpack.c.b16 %v884, %v878
    %v1371 = vpack.c.b16 %v891, %v885
    %v1372 = vpack.c.b16 %v892, %v886
    %v1373 = vpack.c.b16 %v893, %v887
    %v1374 = vpack.c.b16 %v894, %v888
    %v1375 = vpack.c.b16 %v895, %v889
    %v1376 = vpack.c.b16 %v896, %v890
    %v1377 = vpack.c.b16 %v903, %v897
    %v1378 = vpack.c.b16 %v904, %v898
    %v1379 = vpack.c.b16 %v905, %v899
    %v1380 = vpack.c.b16 %v906, %v900
    %v1381 = vpack.c.b16 %v907, %v901
    %v1382 = vpack.c.b16 %v908, %v902
    %v1383 = vpack.c.b16 %v915, %v909
    %v1384 = vpack.c.b16 %v916, %v910
    %v1385 = vpack.c.b16 %v917, %v911
    %v1386 = vpack.c.b16 %v918, %v912
    %v1387 = vpack.c.b16 %v919, %v913
    %v1388 = vpack.c.b16 %v920, %v914
    %v1389 = vpack.c.b16 %v927, %v921
    %v1390 = vpack.c.b16 %v928, %v922
    %v1391 = vpack.c.b16 %v929, %v923
    %v1392 = vpack.c.b16 %v930, %v924
    %v1393 = vpack.c.b16 %v931, %v925
    %v1394 = vpack.c.b16 %v932, %v926
    %v1395 = vpack.c.b16 %v939, %v933
    %v1396 = vpack.c.b16 %v940, %v934
    %v1397 = vpack.c.b16 %v941, %v935
    %v1398 = vpack.c.b16 %v942, %v936
    %v1399 = vpack.c.b16 %v943, %v937
    %v1400 = vpack.c.b16 %v944, %v938
    %v1401 = vpack.c.b16 %v951, %v945
    %v1402 = vpack.c.b16 %v952, %v946
    %v1403 = vpack.c.b16 %v953, %v947
    %v1404 = vpack.c.b16 %v954, %v948
    %v1405 = vpack.c.b16 %v955, %v949
    %v1406 = vpack.c.b16 %v956, %v950
    %v1407 = vpack.c.b16 %v963, %v957
    %v1408 = vpack.c.b16 %v964, %v958
    %v1409 = vpack.c.b16 %v965, %v959
    %v1410 = vpack.c.b16 %v966, %v960
    %v1411 = vpack.c.b16 %v967, %v961
    %v1412 = vpack.c.b16 %v968, %v962
    %v1413 = vpack.c.b16 %v975, %v969
    %v1414 = vpack.c.b16 %v976, %v970
    %v1415 = vpack.c.b16 %v977, %v971
    %v1416 = vpack.c.b16 %v978, %v972
    %v1417 = vpack.c.b16 %v979, %v973
    %v1418 = vpack.c.b16 %v980, %v974
    %v1419 = vpack.c.b16 %v987, %v981
    %v1420 = vpack.c.b16 %v988, %v982
    %v1421 = vpack.c.b16 %v989, %v983
    %v1422 = vpack.c.b16 %v990, %v984
    %v1423 = vpack.c.b16 %v991, %v985
    %v1424 = vpack.c.b16 %v992, %v986
    %v1425 = vpack.c.b16 %v999, %v993
    %v1426 = vpack.c.b16 %v1000, %v994
    %v1427 = vpack.c.b16 %v1001, %v995
    %v1428 = vpack.c.b16 %v1002, %v996
    %v1429 = vpack.c.b16 %v1003, %v997
    %v1430 = vpack.c.b16 %v1004, %v998
    %v1431 = vpack.c.b16 %v1011, %v1005
    %v1432 = vpack.c.b16 %v1012, %v1006
    %v1433 = vpack.c.b16 %v1013, %v1007
    %v1434 = vpack.c.b16 %v1014, %v1008
    %v1435 = vpack.c.b16 %v1015, %v1009
    %v1436 = vpack.c.b16 %v1016, %v1010
    %v1437 = vpack.c.b16 %v1023, %v1017
    %v1438 = vpack.c.b16 %v1024, %v1018
    %v1439 = vpack.c.b16 %v1025, %v1019
    %v1440 = vpack.c.b16 %v1026, %v1020
    %v1441 = vpack.c.b16 %v1027, %v1021
    %v1442 = vpack.c.b16 %v1028, %v1022
    %v1443 = vpack.c.b16 %v1035, %v1029
    %v1444 = vpack.c.b16 %v1036, %v1030
    %v1445 = vpack.c.b16 %v1037, %v1031
    %v1446 = vpack.c.b16 %v1038, %v1032
    %v1447 = vpack.c.b16 %v1039, %v1033
    %v1448 = vpack.c.b16 %v1040, %v1034
    %v1449 = vpack.c.b16 %v1047, %v1041
    %v1450 = vpack.c.b16 %v1048, %v1042
    %v1451 = vpack.c.b16 %v1049, %v1043
    %v1452 = vpack.c.b16 %v1050, %v1044
    %v1453 = vpack.c.b16 %v1051, %v1045
    %v1454 = vpack.c.b16 %v1052, %v1046
    %v1455 = vpack.c.b16 %v1059, %v1053
    %v1456 = vpack.c.b16 %v1060, %v1054
    %v1457 = vpack.c.b16 %v1061, %v1055
    %v1458 = vpack.c.b16 %v1062, %v1056
    %v1459 = vpack.c.b16 %v1063, %v1057
    %v1460 = vpack.c.b16 %v1064, %v1058
    %v1461 = vpack.c.b16 %v1071, %v1065
    %v1462 = vpack.c.b16 %v1072, %v1066
    %v1463 = vpack.c.b16 %v1073, %v1067
    %v1464 = vpack.c.b16 %v1074, %v1068
    %v1465 = vpack.c.b16 %v1075, %v1069
    %v1466 = vpack.c.b16 %v1076, %v1070
    %v1467 = vpack.c.b16 %v1083, %v1077
    %v1468 = vpack.c.b16 %v1084, %v1078
    %v1469 = vpack.c.b16 %v1085, %v1079
    %v1470 = vpack.c.b16 %v1086, %v1080
    %v1471 = vpack.c.b16 %v1087, %v1081
    %v1472 = vpack.c.b16 %v1088, %v1082
    %v1473 = vpack.c.b16 %v1095, %v1089
    %v1474 = vpack.c.b16 %v1096, %v1090
    %v1475 = vpack.c.b16 %v1097, %v1091
    %v1476 = vpack.c.b16 %v1098, %v1092
    %v1477 = vpack.c.b16 %v1099, %v1093
    %v1478 = vpack.c.b16 %v1100, %v1094
    %v1479 = vpack.c.b16 %v1107, %v1101
    %v1480 = vpack.c.b16 %v1108, %v1102
    %v1481 = vpack.c.b16 %v1109, %v1103
    %v1482 = vpack.c.b16 %v1110, %v1104
    %v1483 = vpack.c.b16 %v1111, %v1105
    %v1484 = vpack.c.b16 %v1112, %v1106
    %v1485 = vpack.c.b16 %v1119, %v1113
    %v1486 = vpack.c.b16 %v1120, %v1114
    %v1487 = vpack.c.b16 %v1121, %v1115
    %v1488 = vpack.c.b16 %v1122, %v1116
    %v1489 = vpack.c.b16 %v1123, %v1117
    %v1490 = vpack.c.b16 %v1124, %v1118
    %v1491 = vpack.c.b16 %v1131, %v1125
    %v1492 = vpack.c.b16 %v1132, %v1126
    %v1493 = vpack.c.b16 %v1133, %v1127
    %v1494 = vpack.c.b16 %v1134, %v1128
    %v1495 = vpack.c.b16 %v1135, %v1129
    %v1496 = vpack.c.b16 %v1136, %v1130
    %v1497 = vpack.c.b16 %v1143, %v1137
    %v1498 = vpack.c.b16 %v1144, %v1138
    %v1499 = vpack.c.b16 %v1145, %v1139
    %v1500 = vpack.c.b16 %v1146, %v1140
    %v1501 = vpack.c.b16 %v1147, %v1141
    %v1502 = vpack.c.b16 %v1148, %v1142
    %v1503 = vpack.c.b16 %v1155, %v1149
    %v1504 = vpack.c.b16 %v1156, %v1150
    %v1505 = vpack.c.b16 %v1157, %v1151
    %v1506 = vpack.c.b16 %v1158, %v1152
    %v1507 = vpack.c.b16 %v1159, %v1153
    %v1508 = vpack.c.b16 %v1160, %v1154
    %v1509 = vpack.c.b16 %v1167, %v1161
    %v1510 = vpack.c.b16 %v1168, %v1162
    %v1511 = vpack.c.b16 %v1169, %v1163
    %v1512 = vpack.c.b16 %v1170, %v1164
    %v1513 = vpack.c.b16 %v1171, %v1165
    %v1514 = vpack.c.b16 %v1172, %v1166
    %v1515 = vpack.c.b16 %v1179, %v1173
    %v1516 = vpack.c.b16 %v1180, %v1174
    %v1517 = vpack.c.b16 %v1181, %v1175
    %v1518 = vpack.c.b16 %v1182, %v1176
    %v1519 = vpack.c.b16 %v1183, %v1177
    %v1520 = vpack.c.b16 %v1184, %v1178
    %v1521 = vpack.c.b16 %v1191, %v1185
    %v1522 = vpack.c.b16 %v1192, %v1186
    %v1523 = vpack.c.b16 %v1193, %v1187
    %v1524 = vpack.c.b16 %v1194, %v1188
    %v1525 = vpack.c.b16 %v1195, %v1189
    %v1526 = vpack.c.b16 %v1196, %v1190
    %v1527 = vpack.c.b16 %v1203, %v1197
    %v1528 = vpack.c.b16 %v1204, %v1198
    %v1529 = vpack.c.b16 %v1205, %v1199
    %v1530 = vpack.c.b16 %v1206, %v1200
    %v1531 = vpack.c.b16 %v1207, %v1201
    %v1532 = vpack.c.b16 %v1208, %v1202
    %v1533 = vpack.c.b16 %v1215, %v1209
    %v1534 = vpack.c.b16 %v1216, %v1210
    %v1535 = vpack.c.b16 %v1217, %v1211
    %v1536 = vpack.c.b16 %v1218, %v1212
    %v1537 = vpack.c.b16 %v1219, %v1213
    %v1538 = vpack.c.b16 %v1220, %v1214
    %v1539 = vpack.c.b16 %v1227, %v1221
    %v1540 = vpack.c.b16 %v1228, %v1222
    %v1541 = vpack.c.b16 %v1229, %v1223
    %v1542 = vpack.c.b16 %v1230, %v1224
    %v1543 = vpack.c.b16 %v1231, %v1225
    %v1544 = vpack.c.b16 %v1232, %v1226
    %v1545 = vpack.c.b16 %v1239, %v1233
    %v1546 = vpack.c.b16 %v1240, %v1234
    %v1547 = vpack.c.b16 %v1241, %v1235
    %v1548 = vpack.c.b16 %v1242, %v1236
    %v1549 = vpack.c.b16 %v1243, %v1237
    %v1550 = vpack.c.b16 %v1244, %v1238
    %v1551 = vpack.c.b16 %v1251, %v1245
    %v1552 = vpack.c.b16 %v1252, %v1246
    %v1553 = vpack.c.b16 %v1253, %v1247
    %v1554 = vpack.c.b16 %v1254, %v1248
    %v1555 = vpack.c.b16 %v1255, %v1249
    %v1556 = vpack.c.b16 %v1256, %v1250
    %v1557 = vpack.c.b16 %v1263, %v1257
    %v1558 = vpack.c.b16 %v1264, %v1258
    %v1559 = vpack.c.b16 %v1265, %v1259
    %v1560 = vpack.c.b16 %v1266, %v1260
    %v1561 = vpack.c.b16 %v1267, %v1261
    %v1562 = vpack.c.b16 %v1268, %v1262
    %v1563 = vpack.c.b16 %v1275, %v1269
    %v1564 = vpack.c.b16 %v1276, %v1270
    %v1565 = vpack.c.b16 %v1277, %v1271
    %v1566 = vpack.c.b16 %v1278, %v1272
    %v1567 = vpack.c.b16 %v1279, %v1273
    %v1568 = vpack.c.b16 %v1280, %v1274
    %1857 = vmatprep.subr.bf16.mxu0 %v1282
    %1858 = vmatpush1.bf16.msra.mxu0 %v1281
    %1859 = vmatprep.subr.bf16.mxu0 %v1288
    %1860 = vmatpush1.bf16.msra.mxu0 %v1287
    %1861 = vmatprep.subr.bf16.mxu0 %v1294
    %1862 = vmatpush1.bf16.msra.mxu0 %v1293
    %1863 = vmatprep.subr.bf16.mxu0 %v1300
    %1864 = vmatpush1.bf16.msra.mxu0 %v1299
    %1865 = vmatprep.subr.bf16.mxu0 %v1306
    %1866 = vmatpush1.bf16.msra.mxu0 %v1305
    %1867 = vmatprep.subr.bf16.mxu0 %v1312
    %1868 = vmatpush1.bf16.msra.mxu0 %v1311
    %1869 = vmatprep.subr.bf16.mxu0 %v1318
    %1870 = vmatpush1.bf16.msra.mxu0 %v1317
    %1871 = vmatprep.subr.bf16.mxu0 %v1324
    %1872 = vmatpush1.bf16.msra.mxu0 %v1323
    %1873 = vmatprep.subr.bf16.mxu0 %v1330
    %1874 = vmatpush1.bf16.msra.mxu0 %v1329
    %1875 = vmatprep.subr.bf16.mxu0 %v1336
    %1876 = vmatpush1.bf16.msra.mxu0 %v1335
    %1877 = vmatprep.subr.bf16.mxu0 %v1342
    %1878 = vmatpush1.bf16.msra.mxu0 %v1341
    %1879 = vmatprep.subr.bf16.mxu0 %v1348
    %1880 = vmatpush1.bf16.msra.mxu0 %v1347
    %1881 = vmatprep.subr.bf16.mxu0 %v1354
    %1882 = vmatpush1.bf16.msra.mxu0 %v1353
    %1883 = vmatprep.subr.bf16.mxu0 %v1360
    %1884 = vmatpush1.bf16.msra.mxu0 %v1359
    %1885 = vmatprep.subr.bf16.mxu0 %v1366
    %1886 = vmatpush1.bf16.msra.mxu0 %v1365
    %1887 = vmatprep.subr.bf16.mxu0 %v1372
    %1888 = vmatpush1.bf16.msra.mxu0 %v1371
    %1889 = vmatprep.mubr.bf16.mxu0 %v93
    %1890 = vmatmul.mubr.bf16.gmra.mrb[0].mxu0 %v92
    %v1891 = vpop.f32.mrb[0].mxu0
    %v1892 = vadd.f32 %v390, %v1891
    %v1893 = vpop.f32.mrb[0].mxu0
    %v1894 = vadd.f32 %v394, %v1893
    %v1895 = vpop.f32.mrb[0].mxu0
    %v1896 = vadd.f32 %v390, %v1895
    %v1897 = vpop.f32.mrb[0].mxu0
    %v1898 = vadd.f32 %v394, %v1897
    %1899 = vdwg.mxu0
    %1900 = vmatprep.subr.bf16.mxu0 %v1378
    %1901 = vmatpush1.bf16.msra.mxu0 %v1377
    %1902 = vmatprep.subr.bf16.mxu0 %v1384
    %1903 = vmatpush1.bf16.msra.mxu0 %v1383
    %1904 = vmatprep.subr.bf16.mxu0 %v1390
    %1905 = vmatpush1.bf16.msra.mxu0 %v1389
    %1906 = vmatprep.subr.bf16.mxu0 %v1396
    %1907 = vmatpush1.bf16.msra.mxu0 %v1395
    %1908 = vmatprep.subr.bf16.mxu0 %v1402
    %1909 = vmatpush1.bf16.msra.mxu0 %v1401
    %1910 = vmatprep.subr.bf16.mxu0 %v1408
    %1911 = vmatpush1.bf16.msra.mxu0 %v1407
    %1912 = vmatprep.subr.bf16.mxu0 %v1414
    %1913 = vmatpush1.bf16.msra.mxu0 %v1413
    %1914 = vmatprep.subr.bf16.mxu0 %v1420
    %1915 = vmatpush1.bf16.msra.mxu0 %v1419
    %1916 = vmatprep.subr.bf16.mxu0 %v1426
    %1917 = vmatpush1.bf16.msra.mxu0 %v1425
    %1918 = vmatprep.subr.bf16.mxu0 %v1432
    %1919 = vmatpush1.bf16.msra.mxu0 %v1431
    %1920 = vmatprep.subr.bf16.mxu0 %v1438
    %1921 = vmatpush1.bf16.msra.mxu0 %v1437
    %1922 = vmatprep.subr.bf16.mxu0 %v1444
    %1923 = vmatpush1.bf16.msra.mxu0 %v1443
    %1924 = vmatprep.subr.bf16.mxu0 %v1450
    %1925 = vmatpush1.bf16.msra.mxu0 %v1449
    %1926 = vmatprep.subr.bf16.mxu0 %v1456
    %1927 = vmatpush1.bf16.msra.mxu0 %v1455
    %1928 = vmatprep.subr.bf16.mxu0 %v1462
    %1929 = vmatpush1.bf16.msra.mxu0 %v1461
    %1930 = vmatprep.subr.bf16.mxu0 %v1468
    %1931 = vmatpush1.bf16.msra.mxu0 %v1467
    %1932 = vmatprep.mubr.bf16.mxu0 %v95
    %1933 = vmatmul.mubr.bf16.gmra.mrb[0].mxu0 %v94
    %v1934 = vpop.f32.mrb[0].mxu0
    %v1935 = vadd.f32 %v1892, %v1934
    %v1936 = vpop.f32.mrb[0].mxu0
    %v1937 = vadd.f32 %v1894, %v1936
    %v1938 = vpop.f32.mrb[0].mxu0
    %v1939 = vadd.f32 %v1896, %v1938
    %v1940 = vpop.f32.mrb[0].mxu0
    %v1941 = vadd.f32 %v1898, %v1940
    %1942 = vdwg.mxu0
    %1943 = vmatprep.subr.bf16.mxu0 %v1474
    %1944 = vmatpush1.bf16.msra.mxu0 %v1473
    %1945 = vmatprep.subr.bf16.mxu0 %v1480
    %1946 = vmatpush1.bf16.msra.mxu0 %v1479
    %1947 = vmatprep.subr.bf16.mxu0 %v1486
    %1948 = vmatpush1.bf16.msra.mxu0 %v1485
    %1949 = vmatprep.subr.bf16.mxu0 %v1492
    %1950 = vmatpush1.bf16.msra.mxu0 %v1491
    %1951 = vmatprep.subr.bf16.mxu0 %v1498
    %1952 = vmatpush1.bf16.msra.mxu0 %v1497
    %1953 = vmatprep.subr.bf16.mxu0 %v1504
    %1954 = vmatpush1.bf16.msra.mxu0 %v1503
    %1955 = vmatprep.subr.bf16.mxu0 %v1510
    %1956 = vmatpush1.bf16.msra.mxu0 %v1509
    %1957 = vmatprep.subr.bf16.mxu0 %v1516
    %1958 = vmatpush1.bf16.msra.mxu0 %v1515
    %1959 = vmatprep.subr.bf16.mxu0 %v1522
    %1960 = vmatpush1.bf16.msra.mxu0 %v1521
    %1961 = vmatprep.subr.bf16.mxu0 %v1528
    %1962 = vmatpush1.bf16.msra.mxu0 %v1527
    %1963 = vmatprep.subr.bf16.mxu0 %v1534
    %1964 = vmatpush1.bf16.msra.mxu0 %v1533
    %1965 = vmatprep.subr.bf16.mxu0 %v1540
    %1966 = vmatpush1.bf16.msra.mxu0 %v1539
    %1967 = vmatprep.subr.bf16.mxu0 %v1546
    %1968 = vmatpush1.bf16.msra.mxu0 %v1545
    %1969 = vmatprep.subr.bf16.mxu0 %v1552
    %1970 = vmatpush1.bf16.msra.mxu0 %v1551
    %1971 = vmatprep.subr.bf16.mxu0 %v1558
    %1972 = vmatpush1.bf16.msra.mxu0 %v1557
    %1973 = vmatprep.subr.bf16.mxu0 %v1564
    %1974 = vmatpush1.bf16.msra.mxu0 %v1563
    %1975 = vmatprep.mubr.bf16.mxu0 %v97
    %1976 = vmatmul.mubr.bf16.gmra.mrb[0].mxu0 %v96
    %v1977 = vpop.f32.mrb[0].mxu0
    %v1978 = vadd.f32 %v1935, %v1977
    %v1979 = vpop.f32.mrb[0].mxu0
    %v1980 = vadd.f32 %v1937, %v1979
    %v1981 = vpop.f32.mrb[0].mxu0
    %v1982 = vadd.f32 %v1939, %v1981
    %v1983 = vpop.f32.mrb[0].mxu0
    %v1984 = vadd.f32 %v1941, %v1983
    %1985 = vdwg.mxu0
    %1986 = vmatprep.subr.bf16.mxu0 %v1284
    %1987 = vmatpush1.bf16.msra.mxu0 %v1283
    %1988 = vmatprep.subr.bf16.mxu0 %v1290
    %1989 = vmatpush1.bf16.msra.mxu0 %v1289
    %1990 = vmatprep.subr.bf16.mxu0 %v1296
    %1991 = vmatpush1.bf16.msra.mxu0 %v1295
    %1992 = vmatprep.subr.bf16.mxu0 %v1302
    %1993 = vmatpush1.bf16.msra.mxu0 %v1301
    %1994 = vmatprep.subr.bf16.mxu0 %v1308
    %1995 = vmatpush1.bf16.msra.mxu0 %v1307
    %1996 = vmatprep.subr.bf16.mxu0 %v1314
    %1997 = vmatpush1.bf16.msra.mxu0 %v1313
    %1998 = vmatprep.subr.bf16.mxu0 %v1320
    %1999 = vmatpush1.bf16.msra.mxu0 %v1319
    %2000 = vmatprep.subr.bf16.mxu0 %v1326
    %2001 = vmatpush1.bf16.msra.mxu0 %v1325
    %2002 = vmatprep.subr.bf16.mxu0 %v1332
    %2003 = vmatpush1.bf16.msra.mxu0 %v1331
    %2004 = vmatprep.subr.bf16.mxu0 %v1338
    %2005 = vmatpush1.bf16.msra.mxu0 %v1337
    %2006 = vmatprep.subr.bf16.mxu0 %v1344
    %2007 = vmatpush1.bf16.msra.mxu0 %v1343
    %2008 = vmatprep.subr.bf16.mxu0 %v1350
    %2009 = vmatpush1.bf16.msra.mxu0 %v1349
    %2010 = vmatprep.subr.bf16.mxu0 %v1356
    %2011 = vmatpush1.bf16.msra.mxu0 %v1355
    %2012 = vmatprep.subr.bf16.mxu0 %v1362
    %2013 = vmatpush1.bf16.msra.mxu0 %v1361
    %2014 = vmatprep.subr.bf16.mxu0 %v1368
    %2015 = vmatpush1.bf16.msra.mxu0 %v1367
    %2016 = vmatprep.subr.bf16.mxu0 %v1374
    %2017 = vmatpush1.bf16.msra.mxu0 %v1373
    %2018 = vmatprep.mubr.bf16.mxu0 %v93
    %2019 = vmatmul.mubr.bf16.gmra.mrb[0].mxu0 %v92
    %v2020 = vpop.f32.mrb[0].mxu0
    %v2021 = vadd.f32 %v398, %v2020
    %v2022 = vpop.f32.mrb[0].mxu0
    %v2023 = vadd.f32 %v402, %v2022
    %v2024 = vpop.f32.mrb[0].mxu0
    %v2025 = vadd.f32 %v398, %v2024
    %v2026 = vpop.f32.mrb[0].mxu0
    %v2027 = vadd.f32 %v402, %v2026
    %2028 = vdwg.mxu0
    %2029 = vmatprep.subr.bf16.mxu0 %v1380
    %2030 = vmatpush1.bf16.msra.mxu0 %v1379
    %2031 = vmatprep.subr.bf16.mxu0 %v1386
    %2032 = vmatpush1.bf16.msra.mxu0 %v1385
    %2033 = vmatprep.subr.bf16.mxu0 %v1392
    %2034 = vmatpush1.bf16.msra.mxu0 %v1391
    %2035 = vmatprep.subr.bf16.mxu0 %v1398
    %2036 = vmatpush1.bf16.msra.mxu0 %v1397
    %2037 = vmatprep.subr.bf16.mxu0 %v1404
    %2038 = vmatpush1.bf16.msra.mxu0 %v1403
    %2039 = vmatprep.subr.bf16.mxu0 %v1410
    %2040 = vmatpush1.bf16.msra.mxu0 %v1409
    %2041 = vmatprep.subr.bf16.mxu0 %v1416
    %2042 = vmatpush1.bf16.msra.mxu0 %v1415
    %2043 = vmatprep.subr.bf16.mxu0 %v1422
    %2044 = vmatpush1.bf16.msra.mxu0 %v1421
    %2045 = vmatprep.subr.bf16.mxu0 %v1428
    %2046 = vmatpush1.bf16.msra.mxu0 %v1427
    %2047 = vmatprep.subr.bf16.mxu0 %v1434
    %2048 = vmatpush1.bf16.msra.mxu0 %v1433
    %2049 = vmatprep.subr.bf16.mxu0 %v1440
    %2050 = vmatpush1.bf16.msra.mxu0 %v1439
    %2051 = vmatprep.subr.bf16.mxu0 %v1446
    %2052 = vmatpush1.bf16.msra.mxu0 %v1445
    %2053 = vmatprep.subr.bf16.mxu0 %v1452
    %2054 = vmatpush1.bf16.msra.mxu0 %v1451
    %2055 = vmatprep.subr.bf16.mxu0 %v1458
    %2056 = vmatpush1.bf16.msra.mxu0 %v1457
    %2057 = vmatprep.subr.bf16.mxu0 %v1464
    %2058 = vmatpush1.bf16.msra.mxu0 %v1463
    %2059 = vmatprep.subr.bf16.mxu0 %v1470
    %2060 = vmatpush1.bf16.msra.mxu0 %v1469
    %2061 = vmatprep.mubr.bf16.mxu0 %v95
    %2062 = vmatmul.mubr.bf16.gmra.mrb[0].mxu0 %v94
    %v2063 = vpop.f32.mrb[0].mxu0
    %v2064 = vadd.f32 %v2021, %v2063
    %v2065 = vpop.f32.mrb[0].mxu0
    %v2066 = vadd.f32 %v2023, %v2065
    %v2067 = vpop.f32.mrb[0].mxu0
    %v2068 = vadd.f32 %v2025, %v2067
    %v2069 = vpop.f32.mrb[0].mxu0
    %v2070 = vadd.f32 %v2027, %v2069
    %2071 = vdwg.mxu0
    %2072 = vmatprep.subr.bf16.mxu0 %v1476
    %2073 = vmatpush1.bf16.msra.mxu0 %v1475
    %2074 = vmatprep.subr.bf16.mxu0 %v1482
    %2075 = vmatpush1.bf16.msra.mxu0 %v1481
    %2076 = vmatprep.subr.bf16.mxu0 %v1488
    %2077 = vmatpush1.bf16.msra.mxu0 %v1487
    %2078 = vmatprep.subr.bf16.mxu0 %v1494
    %2079 = vmatpush1.bf16.msra.mxu0 %v1493
    %2080 = vmatprep.subr.bf16.mxu0 %v1500
    %2081 = vmatpush1.bf16.msra.mxu0 %v1499
    %2082 = vmatprep.subr.bf16.mxu0 %v1506
    %2083 = vmatpush1.bf16.msra.mxu0 %v1505
    %2084 = vmatprep.subr.bf16.mxu0 %v1512
    %2085 = vmatpush1.bf16.msra.mxu0 %v1511
    %2086 = vmatprep.subr.bf16.mxu0 %v1518
    %2087 = vmatpush1.bf16.msra.mxu0 %v1517
    %2088 = vmatprep.subr.bf16.mxu0 %v1524
    %2089 = vmatpush1.bf16.msra.mxu0 %v1523
    %2090 = vmatprep.subr.bf16.mxu0 %v1530
    %2091 = vmatpush1.bf16.msra.mxu0 %v1529
    %2092 = vmatprep.subr.bf16.mxu0 %v1536
    %2093 = vmatpush1.bf16.msra.mxu0 %v1535
    %2094 = vmatprep.subr.bf16.mxu0 %v1542
    %2095 = vmatpush1.bf16.msra.mxu0 %v1541
    %2096 = vmatprep.subr.bf16.mxu0 %v1548
    %2097 = vmatpush1.bf16.msra.mxu0 %v1547
    %2098 = vmatprep.subr.bf16.mxu0 %v1554
    %2099 = vmatpush1.bf16.msra.mxu0 %v1553
    %2100 = vmatprep.subr.bf16.mxu0 %v1560
    %2101 = vmatpush1.bf16.msra.mxu0 %v1559
    %2102 = vmatprep.subr.bf16.mxu0 %v1566
    %2103 = vmatpush1.bf16.msra.mxu0 %v1565
    %2104 = vmatprep.mubr.bf16.mxu0 %v97
    %2105 = vmatmul.mubr.bf16.gmra.mrb[0].mxu0 %v96
    %v2106 = vpop.f32.mrb[0].mxu0
    %v2107 = vadd.f32 %v2064, %v2106
    %v2108 = vpop.f32.mrb[0].mxu0
    %v2109 = vadd.f32 %v2066, %v2108
    %v2110 = vpop.f32.mrb[0].mxu0
    %v2111 = vadd.f32 %v2068, %v2110
    %v2112 = vpop.f32.mrb[0].mxu0
    %v2113 = vadd.f32 %v2070, %v2112
    %2114 = vdwg.mxu0
    %2115 = vmatprep.subr.bf16.mxu0 %v1286
    %2116 = vmatpush1.bf16.msra.mxu0 %v1285
    %2117 = vmatprep.subr.bf16.mxu0 %v1292
    %2118 = vmatpush1.bf16.msra.mxu0 %v1291
    %2119 = vmatprep.subr.bf16.mxu0 %v1298
    %2120 = vmatpush1.bf16.msra.mxu0 %v1297
    %2121 = vmatprep.subr.bf16.mxu0 %v1304
    %2122 = vmatpush1.bf16.msra.mxu0 %v1303
    %2123 = vmatprep.subr.bf16.mxu0 %v1310
    %2124 = vmatpush1.bf16.msra.mxu0 %v1309
    %2125 = vmatprep.subr.bf16.mxu0 %v1316
    %2126 = vmatpush1.bf16.msra.mxu0 %v1315
    %2127 = vmatprep.subr.bf16.mxu0 %v1322
    %2128 = vmatpush1.bf16.msra.mxu0 %v1321
    %2129 = vmatprep.subr.bf16.mxu0 %v1328
    %2130 = vmatpush1.bf16.msra.mxu0 %v1327
    %2131 = vmatprep.subr.bf16.mxu0 %v1334
    %2132 = vmatpush1.bf16.msra.mxu0 %v1333
    %2133 = vmatprep.subr.bf16.mxu0 %v1340
    %2134 = vmatpush1.bf16.msra.mxu0 %v1339
    %2135 = vmatprep.subr.bf16.mxu0 %v1346
    %2136 = vmatpush1.bf16.msra.mxu0 %v1345
    %2137 = vmatprep.subr.bf16.mxu0 %v1352
    %2138 = vmatpush1.bf16.msra.mxu0 %v1351
    %2139 = vmatprep.subr.bf16.mxu0 %v1358
    %2140 = vmatpush1.bf16.msra.mxu0 %v1357
    %2141 = vmatprep.subr.bf16.mxu0 %v1364
    %2142 = vmatpush1.bf16.msra.mxu0 %v1363
    %2143 = vmatprep.subr.bf16.mxu0 %v1370
    %2144 = vmatpush1.bf16.msra.mxu0 %v1369
    %2145 = vmatprep.subr.bf16.mxu0 %v1376
    %2146 = vmatpush1.bf16.msra.mxu0 %v1375
    %2147 = vmatprep.mubr.bf16.mxu0 %v93
    %2148 = vmatmul.mubr.bf16.gmra.mrb[0].mxu0 %v92
    %v2149 = vpop.f32.mrb[0].mxu0
    %v2150 = vadd.f32 %v406, %v2149
    %v2151 = vpop.f32.mrb[0].mxu0
    %v2152 = vadd.f32 %v410, %v2151
    %v2153 = vpop.f32.mrb[0].mxu0
    %v2154 = vadd.f32 %v406, %v2153
    %v2155 = vpop.f32.mrb[0].mxu0
    %v2156 = vadd.f32 %v410, %v2155
    %2157 = vdwg.mxu0
    %2158 = vmatprep.subr.bf16.mxu0 %v1382
    %2159 = vmatpush1.bf16.msra.mxu0 %v1381
    %2160 = vmatprep.subr.bf16.mxu0 %v1388
    %2161 = vmatpush1.bf16.msra.mxu0 %v1387
    %2162 = vmatprep.subr.bf16.mxu0 %v1394
    %2163 = vmatpush1.bf16.msra.mxu0 %v1393
    %2164 = vmatprep.subr.bf16.mxu0 %v1400
    %2165 = vmatpush1.bf16.msra.mxu0 %v1399
    %2166 = vmatprep.subr.bf16.mxu0 %v1406
    %2167 = vmatpush1.bf16.msra.mxu0 %v1405
    %2168 = vmatprep.subr.bf16.mxu0 %v1412
    %2169 = vmatpush1.bf16.msra.mxu0 %v1411
    %2170 = vmatprep.subr.bf16.mxu0 %v1418
    %2171 = vmatpush1.bf16.msra.mxu0 %v1417
    %2172 = vmatprep.subr.bf16.mxu0 %v1424
    %2173 = vmatpush1.bf16.msra.mxu0 %v1423
    %2174 = vmatprep.subr.bf16.mxu0 %v1430
    %2175 = vmatpush1.bf16.msra.mxu0 %v1429
    %2176 = vmatprep.subr.bf16.mxu0 %v1436
    %2177 = vmatpush1.bf16.msra.mxu0 %v1435
    %2178 = vmatprep.subr.bf16.mxu0 %v1442
    %2179 = vmatpush1.bf16.msra.mxu0 %v1441
    %2180 = vmatprep.subr.bf16.mxu0 %v1448
    %2181 = vmatpush1.bf16.msra.mxu0 %v1447
    %2182 = vmatprep.subr.bf16.mxu0 %v1454
    %2183 = vmatpush1.bf16.msra.mxu0 %v1453
    %2184 = vmatprep.subr.bf16.mxu0 %v1460
    %2185 = vmatpush1.bf16.msra.mxu0 %v1459
    %2186 = vmatprep.subr.bf16.mxu0 %v1466
    %2187 = vmatpush1.bf16.msra.mxu0 %v1465
    %2188 = vmatprep.subr.bf16.mxu0 %v1472
    %2189 = vmatpush1.bf16.msra.mxu0 %v1471
    %2190 = vmatprep.mubr.bf16.mxu0 %v95
    %2191 = vmatmul.mubr.bf16.gmra.mrb[0].mxu0 %v94
    %v2192 = vpop.f32.mrb[0].mxu0
    %v2193 = vadd.f32 %v2150, %v2192
    %v2194 = vpop.f32.mrb[0].mxu0
    %v2195 = vadd.f32 %v2152, %v2194
    %v2196 = vpop.f32.mrb[0].mxu0
    %v2197 = vadd.f32 %v2154, %v2196
    %v2198 = vpop.f32.mrb[0].mxu0
    %v2199 = vadd.f32 %v2156, %v2198
    %2200 = vdwg.mxu0
    %2201 = vmatprep.subr.bf16.mxu0 %v1478
    %2202 = vmatpush1.bf16.msra.mxu0 %v1477
    %2203 = vmatprep.subr.bf16.mxu0 %v1484
    %2204 = vmatpush1.bf16.msra.mxu0 %v1483
    %2205 = vmatprep.subr.bf16.mxu0 %v1490
    %2206 = vmatpush1.bf16.msra.mxu0 %v1489
    %2207 = vmatprep.subr.bf16.mxu0 %v1496
    %2208 = vmatpush1.bf16.msra.mxu0 %v1495
    %2209 = vmatprep.subr.bf16.mxu0 %v1502
    %2210 = vmatpush1.bf16.msra.mxu0 %v1501
    %2211 = vmatprep.subr.bf16.mxu0 %v1508
    %2212 = vmatpush1.bf16.msra.mxu0 %v1507
    %2213 = vmatprep.subr.bf16.mxu0 %v1514
    %2214 = vmatpush1.bf16.msra.mxu0 %v1513
    %2215 = vmatprep.subr.bf16.mxu0 %v1520
    %2216 = vmatpush1.bf16.msra.mxu0 %v1519
    %2217 = vmatprep.subr.bf16.mxu0 %v1526
    %2218 = vmatpush1.bf16.msra.mxu0 %v1525
    %2219 = vmatprep.subr.bf16.mxu0 %v1532
    %2220 = vmatpush1.bf16.msra.mxu0 %v1531
    %2221 = vmatprep.subr.bf16.mxu0 %v1538
    %2222 = vmatpush1.bf16.msra.mxu0 %v1537
    %2223 = vmatprep.subr.bf16.mxu0 %v1544
    %2224 = vmatpush1.bf16.msra.mxu0 %v1543
    %2225 = vmatprep.subr.bf16.mxu0 %v1550
    %2226 = vmatpush1.bf16.msra.mxu0 %v1549
    %2227 = vmatprep.subr.bf16.mxu0 %v1556
    %2228 = vmatpush1.bf16.msra.mxu0 %v1555
    %2229 = vmatprep.subr.bf16.mxu0 %v1562
    %2230 = vmatpush1.bf16.msra.mxu0 %v1561
    %2231 = vmatprep.subr.bf16.mxu0 %v1568
    %2232 = vmatpush1.bf16.msra.mxu0 %v1567
    %2233 = vmatprep.mubr.bf16.mxu0 %v97
    %2234 = vmatmul.mubr.bf16.gmra.mrb[0].mxu0 %v96
    %v2235 = vpop.f32.mrb[0].mxu0
    %v2236 = vadd.f32 %v2193, %v2235
    %v2237 = vpop.f32.mrb[0].mxu0
    %v2238 = vadd.f32 %v2195, %v2237
    %v2239 = vpop.f32.mrb[0].mxu0
    %v2240 = vadd.f32 %v2197, %v2239
    %v2241 = vpop.f32.mrb[0].mxu0
    %v2242 = vadd.f32 %v2199, %v2241
    %2243 = vdwg.mxu0
    %v2244 = vtanh.pop %v1978
    %v2245 = vtanh.pop %v1980
    %v2246 = vtanh.pop %v2107
    %v2247 = vtanh.pop %v2109
    %v2248 = vtanh.pop %v2236
    %v2249 = vtanh.pop %v2238
    %v2250 = vtanh.pop %v1982
    %v2251 = vtanh.pop %v1984
    %v2252 = vtanh.pop %v2111
    %v2253 = vtanh.pop %v2113
    %v2254 = vtanh.pop %v2240
    %v2255 = vtanh.pop %v2242
    %v2257 = vlaneseq
    %v2258 = vshrl.u32 %v2257, 7
    %v2259 = vsub.s32 0, %v2258
    %v2260 = vrot.slane %v85, %v2259
    %v2261 = vlaneseq
    %v2262 = vshrl.u32 %v2261, 7
    %v2263 = vsub.s32 1, %v2262
    %v2264 = vrot.slane %v85, %v2263
    %v2265 = vlaneseq
    %v2266 = vshrl.u32 %v2265, 7
    %v2267 = vsub.s32 2, %v2266
    %v2268 = vrot.slane %v85, %v2267
    %v2269 = vlaneseq
    %v2270 = vshrl.u32 %v2269, 7
    %v2271 = vsub.s32 3, %v2270
    %v2272 = vrot.slane %v85, %v2271
    %v2273 = vlaneseq
    %v2274 = vshrl.u32 %v2273, 7
    %v2275 = vsub.s32 4, %v2274
    %v2276 = vrot.slane %v85, %v2275
    %v2277 = vlaneseq
    %v2278 = vshrl.u32 %v2277, 7
    %v2279 = vsub.s32 5, %v2278
    %v2280 = vrot.slane %v85, %v2279
    %v2287 = vmul.f32 %v2244, %v2260
    %v2288 = vmul.f32 %v2245, %v2264
    %v2289 = vmul.f32 %v2246, %v2268
    %v2290 = vmul.f32 %v2247, %v2272
    %v2291 = vmul.f32 %v2248, %v2276
    %v2292 = vmul.f32 %v2249, %v2280
    %v2293 = vmul.f32 %v2250, %v2260
    %v2294 = vmul.f32 %v2251, %v2264
    %v2295 = vmul.f32 %v2252, %v2268
    %v2296 = vmul.f32 %v2253, %v2272
    %v2297 = vmul.f32 %v2254, %v2276
    %v2298 = vmul.f32 %v2255, %v2280
    %v2299 = vadd.f32 %v2287, %v2288
    %v2300 = vadd.f32 %v2299, %v2289
    %v2301 = vadd.f32 %v2300, %v2290
    %v2302 = vadd.f32 %v2301, %v2291
    %v2303 = vadd.f32 %v2302, %v2292
    %2304 = vadd.xlane.f32.xlu0 %v2303
    %v2305 = vpop.xlane.xlu0 %2304
    %v2306 = vadd.f32 %v2293, %v2294
    %v2307 = vadd.f32 %v2306, %v2295
    %v2308 = vadd.f32 %v2307, %v2296
    %v2309 = vadd.f32 %v2308, %v2297
    %v2310 = vadd.f32 %v2309, %v2298
    %2311 = vadd.xlane.f32.xlu0 %v2310
    %v2312 = vpop.xlane.xlu0 %2311
    %v2313 = vstv %s90
    %v2314 = vadd.f32 %v2305, %v2313
    %v2315 = vadd.f32 %v2312, %v2313
    %v2316 = vrot.slane %v2314, 4
    %v2317 = vmax.f32 %v2314, %v2316
    %v2318 = vrot.slane %v2317, 2
    %v2319 = vmax.f32 %v2317, %v2318
    %v2320 = vrot.slane %v2319, 1
    %v2321 = vmax.f32 %v2319, %v2320
    %v2322 = vrot.slane %v2315, 4
    %v2323 = vmax.f32 %v2315, %v2322
    %v2324 = vrot.slane %v2323, 2
    %v2325 = vmax.f32 %v2323, %v2324
    %v2326 = vrot.slane %v2325, 1
    %v2327 = vmax.f32 %v2325, %v2326
    %v2328 = vsub.f32 %v2314, %v2321
    %v2329 = vsub.f32 %v2315, %v2327
    %v2330 = vmul.f32 %v2328, 1.442695
    %v2331 = vpow.pop %v2330
    %v2332 = vmul.f32 %v2329, 1.442695
    %v2333 = vpow.pop %v2332
    %v2334 = vrot.slane %v2331, 4
    %v2335 = vadd.f32 %v2331, %v2334
    %v2336 = vrot.slane %v2335, 2
    %v2337 = vadd.f32 %v2335, %v2336
    %v2338 = vrot.slane %v2337, 1
    %v2339 = vadd.f32 %v2337, %v2338
    %v2340 = vrot.slane %v2333, 4
    %v2341 = vadd.f32 %v2333, %v2340
    %v2342 = vrot.slane %v2341, 2
    %v2343 = vadd.f32 %v2341, %v2342
    %v2344 = vrot.slane %v2343, 1
    %v2345 = vadd.f32 %v2343, %v2344
    %v2346 = vrcp.pop %v2339
    %v2347 = vrcp.pop %v2345
    %v2348 = vmul.f32 %v2331, %v2346
    %v2349 = vmul.f32 %v2333, %v2347
    %v2350 = vmul.f32 %v2348, %v67
    %v2351 = vmul.f32 %v2348, %v68
    %v2352 = vmul.f32 %v2348, %v69
    %v2353 = vmul.f32 %v2348, %v70
    %v2354 = vmul.f32 %v2348, %v71
    %v2355 = vmul.f32 %v2348, %v72
    %v2356 = vmul.f32 %v2349, %v73
    %v2357 = vmul.f32 %v2349, %v74
    %v2358 = vmul.f32 %v2349, %v75
    %v2359 = vmul.f32 %v2349, %v76
    %v2360 = vmul.f32 %v2349, %v77
    %v2361 = vmul.f32 %v2349, %v78
    %v2362 = vrot.slane %v2350, 4
    %v2363 = vadd.f32 %v2350, %v2362
    %v2364 = vrot.slane %v2363, 2
    %v2365 = vadd.f32 %v2363, %v2364
    %v2366 = vrot.slane %v2365, 1
    %v2367 = vadd.f32 %v2365, %v2366
    %v2368 = vrot.slane %v2351, 4
    %v2369 = vadd.f32 %v2351, %v2368
    %v2370 = vrot.slane %v2369, 2
    %v2371 = vadd.f32 %v2369, %v2370
    %v2372 = vrot.slane %v2371, 1
    %v2373 = vadd.f32 %v2371, %v2372
    %v2374 = vrot.slane %v2352, 4
    %v2375 = vadd.f32 %v2352, %v2374
    %v2376 = vrot.slane %v2375, 2
    %v2377 = vadd.f32 %v2375, %v2376
    %v2378 = vrot.slane %v2377, 1
    %v2379 = vadd.f32 %v2377, %v2378
    %v2380 = vrot.slane %v2353, 4
    %v2381 = vadd.f32 %v2353, %v2380
    %v2382 = vrot.slane %v2381, 2
    %v2383 = vadd.f32 %v2381, %v2382
    %v2384 = vrot.slane %v2383, 1
    %v2385 = vadd.f32 %v2383, %v2384
    %v2386 = vrot.slane %v2354, 4
    %v2387 = vadd.f32 %v2354, %v2386
    %v2388 = vrot.slane %v2387, 2
    %v2389 = vadd.f32 %v2387, %v2388
    %v2390 = vrot.slane %v2389, 1
    %v2391 = vadd.f32 %v2389, %v2390
    %v2392 = vrot.slane %v2355, 4
    %v2393 = vadd.f32 %v2355, %v2392
    %v2394 = vrot.slane %v2393, 2
    %v2395 = vadd.f32 %v2393, %v2394
    %v2396 = vrot.slane %v2395, 1
    %v2397 = vadd.f32 %v2395, %v2396
    %v2398 = vrot.slane %v2356, 4
    %v2399 = vadd.f32 %v2356, %v2398
    %v2400 = vrot.slane %v2399, 2
    %v2401 = vadd.f32 %v2399, %v2400
    %v2402 = vrot.slane %v2401, 1
    %v2403 = vadd.f32 %v2401, %v2402
    %v2404 = vrot.slane %v2357, 4
    %v2405 = vadd.f32 %v2357, %v2404
    %v2406 = vrot.slane %v2405, 2
    %v2407 = vadd.f32 %v2405, %v2406
    %v2408 = vrot.slane %v2407, 1
    %v2409 = vadd.f32 %v2407, %v2408
    %v2410 = vrot.slane %v2358, 4
    %v2411 = vadd.f32 %v2358, %v2410
    %v2412 = vrot.slane %v2411, 2
    %v2413 = vadd.f32 %v2411, %v2412
    %v2414 = vrot.slane %v2413, 1
    %v2415 = vadd.f32 %v2413, %v2414
    %v2416 = vrot.slane %v2359, 4
    %v2417 = vadd.f32 %v2359, %v2416
    %v2418 = vrot.slane %v2417, 2
    %v2419 = vadd.f32 %v2417, %v2418
    %v2420 = vrot.slane %v2419, 1
    %v2421 = vadd.f32 %v2419, %v2420
    %v2422 = vrot.slane %v2360, 4
    %v2423 = vadd.f32 %v2360, %v2422
    %v2424 = vrot.slane %v2423, 2
    %v2425 = vadd.f32 %v2423, %v2424
    %v2426 = vrot.slane %v2425, 1
    %v2427 = vadd.f32 %v2425, %v2426
    %v2428 = vrot.slane %v2361, 4
    %v2429 = vadd.f32 %v2361, %v2428
    %v2430 = vrot.slane %v2429, 2
    %v2431 = vadd.f32 %v2429, %v2430
    %v2432 = vrot.slane %v2431, 1
    %v2433 = vadd.f32 %v2431, %v2432
    %v2435 = vlaneseq
    %v2436 = vshrl.u32 %v2435, 7
    %v2437 = vsub.s32 0, %v2436
    %v2438 = vrot.slane %v89, %v2437
    %v2439 = vlaneseq
    %v2440 = vshrl.u32 %v2439, 7
    %v2441 = vsub.s32 1, %v2440
    %v2442 = vrot.slane %v89, %v2441
    %v2443 = vlaneseq
    %v2444 = vshrl.u32 %v2443, 7
    %v2445 = vsub.s32 2, %v2444
    %v2446 = vrot.slane %v89, %v2445
    %v2447 = vlaneseq
    %v2448 = vshrl.u32 %v2447, 7
    %v2449 = vsub.s32 3, %v2448
    %v2450 = vrot.slane %v89, %v2449
    %v2451 = vlaneseq
    %v2452 = vshrl.u32 %v2451, 7
    %v2453 = vsub.s32 4, %v2452
    %v2454 = vrot.slane %v89, %v2453
    %v2455 = vlaneseq
    %v2456 = vshrl.u32 %v2455, 7
    %v2457 = vsub.s32 5, %v2456
    %v2458 = vrot.slane %v89, %v2457
    %v2465 = vmul.f32 %v2367, %v2438
    %v2466 = vmul.f32 %v2373, %v2442
    %v2467 = vmul.f32 %v2379, %v2446
    %v2468 = vmul.f32 %v2385, %v2450
    %v2469 = vmul.f32 %v2391, %v2454
    %v2470 = vmul.f32 %v2397, %v2458
    %v2471 = vmul.f32 %v2403, %v2438
    %v2472 = vmul.f32 %v2409, %v2442
    %v2473 = vmul.f32 %v2415, %v2446
    %v2474 = vmul.f32 %v2421, %v2450
    %v2475 = vmul.f32 %v2427, %v2454
    %v2476 = vmul.f32 %v2433, %v2458
    %v2489 = vrot.slane %v2471, 7
    %vm2490 = vcmask 1041409
    %v2491 = vsel %vm2490, %v2489, %v2465
    %v2492 = vrot.slane %v2472, 7
    %v2493 = vsel %vm2490, %v2492, %v2466
    %v2494 = vrot.slane %v2473, 7
    %v2495 = vsel %vm2490, %v2494, %v2467
    %v2496 = vrot.slane %v2474, 7
    %v2497 = vsel %vm2490, %v2496, %v2468
    %v2498 = vrot.slane %v2475, 7
    %v2499 = vsel %vm2490, %v2498, %v2469
    %v2500 = vrot.slane %v2476, 7
    %v2501 = vsel %vm2490, %v2500, %v2470
    %vm2508 = vcmask 1041408
    %v2509 = vsel %vm2508, %v2491, 0.0
    %v2510 = vsel %vm2508, %v2493, 0.0
    %v2511 = vadd.f32 %v2509, %v2510
    %v2512 = vsel %vm2508, %v2495, 0.0
    %v2513 = vadd.f32 %v2511, %v2512
    %v2514 = vsel %vm2508, %v2497, 0.0
    %v2515 = vadd.f32 %v2513, %v2514
    %v2516 = vsel %vm2508, %v2499, 0.0
    %v2517 = vadd.f32 %v2515, %v2516
    %v2518 = vsel %vm2508, %v2501, 0.0
    %v2519 = vadd.f32 %v2517, %v2518
    %2520 = vadd.xlane.f32.xlu0 %v2519
    %v2521 = vpop.xlane.xlu0 %2520
    %v2522 = vstv %s91
    %v2523 = vadd.f32 %v2521, %v2522
    %vm2524 = vcmask 1024
    %2525 = vst.msk [vmem:[%s4] sm:$0x3] %vm2524, %v2523
    // Predicated region
    $region34: #{tpu_custom_call.1} parent=1 // pred_check
      _
    $region35: #{tpu_custom_call.1} parent=1 // pred_check_branch
      %2527 = sbr.rel (0) target = $region37
    $region36: #{tpu_custom_call.1} parent=1 // pred_region
      _
    $region37: #{tpu_custom_call.1} parent=1 // pred_fallthru
      _
    // Predicated region
    $region38: #{tpu_custom_call.1} parent=1 // pred_check
      _
    $region39: #{tpu_custom_call.1} parent=1 // pred_check_branch
      %2529 = sbr.rel (0) target = $region41
    $region40: #{tpu_custom_call.1} parent=1 // pred_region
      _
    $region41: #{tpu_custom_call.1} parent=1 // pred_fallthru
      _
    %2530 = vsyncpa [#allocation3], 1
    %2531 = vsyncpa [#allocation6], 1
    %2532 = vsyncpa [#allocation4], 1

</llo_original>
